<compile_context>
chip_gen: v7x
topology: tpu7x:2x2x1
jax: 0.10.0
libtpu: 0.0.40
codegen_flags: <defaults>
</compile_context>

<pallas_src>
import functools

import jax
import jax.numpy as jnp
from jax.experimental import pallas as pl
from jax.experimental.pallas import tpu as pltpu

EPSILON = 0.1       # MultiSimilarityMiner default
MARGIN = 0.05       # TripletMarginLoss default
REG_WEIGHT = 1.0    # embedding_regularizer default weight
_NORM_EPS = 1e-16   # clamp on squared L2 norm (~1e-8 on the norm)
_BIG = 3e38         # finite sentinel (avoids inf - inf -> NaN in the relu arg)


def _loss_partials_kernel(predsT_ref, t_row_ref, invn_row_ref, norm_row_ref,
                          emb_all_ref, t_col_ref, invn_col_ref,
                          out_ref, pos_ref, neg_ref,
                          *, n_valid, n_classes, anchor_block):
    ta = anchor_block
    n_pad = emb_all_ref.shape[0]
    c_pad = predsT_ref.shape[0]
    blk_start = pl.multiple_of(pl.program_id(0) * ta, ta)

    # ----- index / validity masks (transposed: sample j on sublanes, anchor a on lanes) -----
    j_ids = jax.lax.broadcasted_iota(jnp.int32, (n_pad, 1), 0)            # (N_pad, 1)
    a_ids = blk_start + jax.lax.broadcasted_iota(jnp.int32, (1, ta), 1)   # (1, TA)
    valid_j = j_ids < n_valid
    valid_a = a_ids < n_valid
    valid_pair = jnp.logical_and(valid_j, valid_a)                        # (N_pad, TA)
    diag = j_ids == a_ids

    # ----- cosine similarity (transposed): simT[j, a] = cos(e_j, e_{blk_start+a}) -----
    e_all = emb_all_ref[...]                                  # (N_pad, D_pad) input dtype
    e_blk = emb_all_ref[pl.ds(blk_start, ta), :]              # anchor block from resident copy
    gram = jax.lax.dot_general(                               # MXU, f32 accumulation
        e_all, e_blk, (((1,), (1,)), ((), ())),
        preferred_element_type=jnp.float32)                   # (N_pad, TA)
    simT = gram * invn_col_ref[...] * invn_row_ref[...]       # rank-1 row/col scaling (f32)

    # ----- MultiSimilarityMiner(eps=0.1): fold hard-pair masks into the sim slabs -----
    same = t_col_ref[...] == t_row_ref[...]                   # (N_pad, TA)
    pos_mask = jnp.logical_and(jnp.logical_and(same, jnp.logical_not(diag)), valid_pair)
    neg_mask = jnp.logical_and(jnp.logical_not(same), valid_pair)

    big = jnp.float32(_BIG)
    max_neg = jnp.max(jnp.where(neg_mask, simT, -big), axis=0, keepdims=True)  # (1, TA)
    min_pos = jnp.min(jnp.where(pos_mask, simT, big), axis=0, keepdims=True)   # (1, TA)
    hard_pos = jnp.logical_and(pos_mask, (simT - EPSILON) < max_neg)
    hard_neg = jnp.logical_and(neg_mask, (simT + EPSILON) > min_pos)

    pos_ref[...] = jnp.where(hard_pos, simT, big)    # +big rows contribute nothing below
    neg_ref[...] = jnp.where(hard_neg, simT, -big)   # -big entries contribute nothing below

    # ----- triplet margin loss over mined triplets (O(N^2) live data) -----
    n_groups = n_pad // 8
    n_pb = (n_valid + 7) // 8      # static: positives processed in blocks of 8

    def body(pb, carry):
        acc_tot, acc_cnt = carry
        p0 = pl.multiple_of(pb * 8, 8)
        neg = neg_ref[...].reshape(n_groups, 8, ta)           # one slab load per 8 positives
        for r in range(8):                                    # 8-way unroll
            c_p = MARGIN - pos_ref[pl.ds(p0 + r, 1), :]       # (1, TA) per-p constant row
            tl = jnp.maximum(neg + c_p, 0.0)                  # (n_groups, 8, TA)
            acc_tot = acc_tot + jnp.sum(tl, axis=0)           # vreg adds (no XLU in the loop)
            acc_cnt = acc_cnt + jnp.sum(jnp.where(tl > 0.0, 1.0, 0.0), axis=0)
        return acc_tot, acc_cnt

    zeros = jnp.zeros((8, ta), jnp.float32)
    acc_tot, acc_cnt = jax.lax.fori_loop(0, n_pb, body, (zeros, zeros))
    tri_tot = jnp.sum(acc_tot)                                # one cross-lane reduce / block
    tri_cnt = jnp.sum(acc_cnt)                                # AvgNonZeroReducer count

    # ----- cross entropy partial sum (classes on sublanes, anchors on lanes) -----
    logits = predsT_ref[...].astype(jnp.float32)              # (C_pad, TA)
    cls_iota = jax.lax.broadcasted_iota(jnp.int32, (c_pad, ta), 0)
    logits = jnp.where(cls_iota < n_classes, logits, -big)    # mask padded classes
    mx = jnp.max(logits, axis=0, keepdims=True)               # (1, TA)
    lse = mx + jnp.log(jnp.sum(jnp.exp(logits - mx), axis=0, keepdims=True))
    picked = jnp.sum(jnp.where(cls_iota == t_row_ref[...], logits, 0.0),
                     axis=0, keepdims=True)                   # (1, TA)
    ce_part = jnp.sum(jnp.where(valid_a, lse - picked, 0.0))

    # ----- L2 embedding regularizer partial sum (sum of row norms) -----
    reg_part = jnp.sum(jnp.where(valid_a, norm_row_ref[...], 0.0))

    # ----- write partial sums into a lane-dense (1, 8, 128) tile -----
    lane = jax.lax.broadcasted_iota(jnp.int32, (8, 128), 1)
    tile = (jnp.where(lane == 0, ce_part, 0.0)
            + jnp.where(lane == 1, reg_part, 0.0)
            + jnp.where(lane == 2, tri_tot, 0.0)
            + jnp.where(lane == 3, tri_cnt, 0.0))
    out_ref[...] = tile[None].astype(jnp.float32)


def _vmem_limit_bytes(n_pad, d_pad, c_pad, ta, emb_itemsize, preds_itemsize):
    resident = n_pad * d_pad * emb_itemsize           # emb, unblocked & single-buffered
    blocked = 2 * (c_pad * ta * preds_itemsize        # predsT anchor block (double-buffered)
                   + 3 * ta * 4                       # t_row / invn_row / norm_row blocks
                   + 2 * n_pad * 128 * 4)             # t_col / invn_col (lane-padded)
    scratch = 2 * n_pad * ta * 4                      # simT_pos / simT_neg slabs
    out = 2 * 8 * 128 * 4
    need = resident + blocked + scratch + out
    need = int(need * 1.5) + (8 << 20)                # headroom for gram/simT/mask temps
    try:
        cap = int(pltpu.get_tpu_info().vmem_capacity_bytes)
    except Exception:
        cap = 64 << 20                                # conservative (v7x-sized) fallback
    return int(min(max(need, 32 << 20), int(cap * 0.75)))


def similarity_combined_loss(emb, preds, targets, *, anchor_block=128):
    """emb: (N, D) float, preds: (N, C) float, targets: (N,) int -> scalar loss."""
    n, d = emb.shape
    n2, c = preds.shape
    assert n == n2
    ta = anchor_block
    n_pad = pl.cdiv(n, ta) * ta
    d_pad = pl.cdiv(d, 128) * 128
    c_pad = pl.cdiv(c, 8) * 8
    g = n_pad // ta

    # Layout plumbing: zero-pad embeddings / logits; per-sample norms computed once
    # here (cheap XLA) instead of per anchor block inside the kernel.
    emb_p = jnp.zeros((n_pad, d_pad), emb.dtype).at[:n, :d].set(emb)
    emb_f = emb.astype(jnp.float32)
    sq = jnp.sum(emb_f * emb_f, axis=1)                                  # (N,)
    inv = jax.lax.rsqrt(jnp.maximum(sq, _NORM_EPS))
    nrm = jnp.sqrt(sq)
    invn_row = jnp.zeros((1, n_pad), jnp.float32).at[0, :n].set(inv)
    invn_col = jnp.zeros((n_pad, 1), jnp.float32).at[:n, 0].set(inv)
    norm_row = jnp.zeros((1, n_pad), jnp.float32).at[0, :n].set(nrm)

    predsT = jnp.zeros((c_pad, n_pad), preds.dtype).at[:c, :n].set(preds.T)
    tgt = targets.astype(jnp.int32)
    t_row = jnp.zeros((1, n_pad), jnp.int32).at[0, :n].set(tgt)
    t_col = jnp.zeros((n_pad, 1), jnp.int32).at[:n, 0].set(tgt)

    kernel = functools.partial(_loss_partials_kernel,
                               n_valid=n, n_classes=c, anchor_block=ta)

    grid_spec = pltpu.PrefetchScalarGridSpec(
        num_scalar_prefetch=0,
        grid=(g,),
        in_specs=[
            pl.BlockSpec((c_pad, ta), lambda i: (0, i)),       # logits^T, anchor block
            pl.BlockSpec((1, ta), lambda i: (0, i)),           # anchor-block targets
            pl.BlockSpec((1, ta), lambda i: (0, i)),           # anchor-block 1/||e||
            pl.BlockSpec((1, ta), lambda i: (0, i)),           # anchor-block ||e||
            # Whole embedding array resident in VMEM (single-buffered, no per-step DMA):
            pl.BlockSpec(memory_space=pltpu.MemorySpace.VMEM),
            pl.BlockSpec((n_pad, 1), lambda i: (0, 0)),        # all targets (tiny)
            pl.BlockSpec((n_pad, 1), lambda i: (0, 0)),        # all 1/||e|| (tiny)
        ],
        out_specs=pl.BlockSpec((1, 8, 128), lambda i: (i, 0, 0)),
        scratch_shapes=[
            pltpu.VMEM((n_pad, ta), jnp.float32),   # simT_pos (hard-positive folded)
            pltpu.VMEM((n_pad, ta), jnp.float32),   # simT_neg (hard-negative folded)
        ],
    )

    vmem_bytes = _vmem_limit_bytes(n_pad, d_pad, c_pad, ta,
                                   emb.dtype.itemsize, preds.dtype.itemsize)

    parts = pl.pallas_call(
        kernel,
        out_shape=jax.ShapeDtypeStruct((g, 8, 128), jnp.float32),
        grid_spec=grid_spec,
        compiler_params=pltpu.CompilerParams(
            dimension_semantics=("parallel",),
            vmem_limit_bytes=vmem_bytes,
        ),
    )(predsT, t_row, invn_row, norm_row, emb_p, t_col, invn_col)

    # Tiny cross-block combine (4 scalars per anchor block) in the wrapper so the
    # anchor axis can stay "parallel" across TensorCores.
    sums = jnp.sum(parts[:, 0, :], axis=0)        # (128,)
    ce = sums[0] / n
    reg = sums[1] / n
    tri_tot, tri_cnt = sums[2], sums[3]
    tri = jnp.where(tri_cnt > 0.0, tri_tot / jnp.maximum(tri_cnt, 1.0), 0.0)
    return ce + tri + REG_WEIGHT * reg


def _reference_loss(emb, preds, targets):
    """Pure-JAX reference (materializes the O(N^3) cube; small N only)."""
    emb = emb.astype(jnp.float32)
    preds = preds.astype(jnp.float32)
    n = emb.shape[0]
    mx = jnp.max(preds, axis=-1, keepdims=True)
    lse = mx[:, 0] + jnp.log(jnp.sum(jnp.exp(preds - mx), axis=-1))
    picked = jnp.take_along_axis(preds, targets.astype(jnp.int32)[:, None], axis=-1)[:, 0]
    ce = jnp.mean(lse - picked)

    sq = jnp.sum(emb * emb, axis=-1, keepdims=True)
    en = emb * jax.lax.rsqrt(jnp.maximum(sq, _NORM_EPS))
    sim = en @ en.T
    same = targets[:, None] == targets[None, :]
    eye = jnp.eye(n, dtype=bool)
    pos = same & ~eye
    neg = ~same
    max_neg = jnp.max(jnp.where(neg, sim, -jnp.inf), axis=1, keepdims=True)
    min_pos = jnp.min(jnp.where(pos, sim, jnp.inf), axis=1, keepdims=True)
    hp = pos & ((sim - EPSILON) < max_neg)
    hn = neg & ((sim + EPSILON) > min_pos)
    tl = jnp.maximum(sim[:, None, :] - sim[:, :, None] + MARGIN, 0.0)
    w = (hp[:, :, None] & hn[:, None, :]).astype(jnp.float32)
    tot = jnp.sum(tl * w)
    cnt = jnp.sum(jnp.where(tl > 0.0, w, 0.0))
    tri = jnp.where(cnt > 0.0, tot / jnp.maximum(cnt, 1.0), 0.0)
    reg = jnp.mean(jnp.sqrt(jnp.sum(emb * emb, axis=-1)))
    return ce + tri + REG_WEIGHT * reg


if __name__ == "__main__":
    N, D, C = 8, 32, 5  # batch, embedding dim, num classes

    key = jax.random.PRNGKey(0)
    k_emb, k_preds, k_tgt = jax.random.split(key, 3)
    emb = jax.random.normal(k_emb, (N, D), dtype=jnp.float32)
    preds = jax.random.normal(k_preds, (N, C), dtype=jnp.float32)
    targets = jax.random.randint(k_tgt, (N,), 0, C, dtype=jnp.int32)

    loss = jax.block_until_ready(similarity_combined_loss(emb, preds, targets))
    ref = jax.block_until_ready(_reference_loss(emb, preds, targets))

    assert loss.shape == () and bool(jnp.isfinite(loss))
    assert bool(jnp.allclose(loss, ref, rtol=1e-3, atol=1e-3)), (loss, ref)
    print("KERNEL_OK")
</pallas_src>

<mosaic_0001>
module attributes {stable_mosaic.version = 11 : i64} {
  func.func @_loss_partials_kernel(%arg0: i32, %arg1: memref<8x128xf32, #tpu.memory_space<vmem>>, %arg2: memref<1x128xi32, #tpu.memory_space<vmem>>, %arg3: memref<1x128xf32, #tpu.memory_space<vmem>>, %arg4: memref<1x128xf32, #tpu.memory_space<vmem>>, %arg5: memref<128x128xf32, #tpu.memory_space<vmem>>, %arg6: memref<128x1xi32, #tpu.memory_space<vmem>>, %arg7: memref<128x1xf32, #tpu.memory_space<vmem>>, %arg8: memref<1x8x128xf32, #tpu.memory_space<vmem>>, %arg9: memref<128x128xf32, #tpu.memory_space<vmem>>, %arg10: memref<128x128xf32, #tpu.memory_space<vmem>>) attributes {dimension_semantics = [#tpu.dimension_semantics<parallel>], iteration_bounds = array<i64: 1>, scalar_prefetch = 0 : i64, scratch_operands = 2 : i64, tpu.core_type = #tpu.core_type<tc>, window_params = [{transform_indices = @transform_0, window_bounds = array<i64: 8, 128>}, {transform_indices = @transform_1, window_bounds = array<i64: 1, 128>}, {transform_indices = @transform_2, window_bounds = array<i64: 1, 128>}, {transform_indices = @transform_3, window_bounds = array<i64: 1, 128>}, {pipeline_mode = #tpu.pipeline_mode<synchronous>, transform_indices = @transform_4, window_bounds = array<i64: 128, 128>}, {pipeline_mode = #tpu.pipeline_mode<synchronous>, transform_indices = @transform_5, window_bounds = array<i64: 128, 1>}, {pipeline_mode = #tpu.pipeline_mode<synchronous>, transform_indices = @transform_6, window_bounds = array<i64: 128, 1>}, {transform_indices = @transform_7, window_bounds = array<i64: 1, 8, 128>}]} {
    %c128_i32 = arith.constant 128 : i32
    %0 = arith.muli %arg0, %c128_i32 : i32
    %1 = tpu.assume_multiple %0, 128 : i32
    %2 = tpu.iota {dimensions = array<i32: 0>} : vector<128x1xi32>
    %3 = tpu.iota {dimensions = array<i32: 1>} : vector<1x128xi32>
    %4 = vector.broadcast %1 : i32 to vector<1x128xi32>
    %5 = arith.addi %4, %3 : vector<1x128xi32>
    %c8_i32 = arith.constant 8 : i32
    %6 = vector.broadcast %c8_i32 : i32 to vector<128x1xi32>
    %7 = arith.cmpi slt, %2, %6 : vector<128x1xi32>
    %c8_i32_0 = arith.constant 8 : i32
    %8 = vector.broadcast %c8_i32_0 : i32 to vector<1x128xi32>
    %9 = arith.cmpi slt, %5, %8 : vector<1x128xi32>
    %10 = vector.broadcast %7 : vector<128x1xi1> to vector<128x128xi1>
    %11 = vector.broadcast %9 : vector<1x128xi1> to vector<128x128xi1>
    %12 = arith.andi %10, %11 : vector<128x128xi1>
    %13 = vector.broadcast %2 : vector<128x1xi32> to vector<128x128xi32>
    %14 = vector.broadcast %5 : vector<1x128xi32> to vector<128x128xi32>
    %15 = arith.cmpi eq, %13, %14 : vector<128x128xi32>
    %c0 = arith.constant 0 : index
    %c0_1 = arith.constant 0 : index
    %16 = vector.load %arg5[%c0, %c0_1] : memref<128x128xf32, #tpu.memory_space<vmem>>, vector<128x128xf32>
    %17 = arith.index_cast %1 : i32 to index
    %c0_2 = arith.constant 0 : index
    %18 = vector.load %arg5[%17, %c0_2] : memref<128x128xf32, #tpu.memory_space<vmem>>, vector<128x128xf32>
    %cst = arith.constant dense<0.000000e+00> : vector<128x128xf32>
    %19 = tpu.matmul %16, %18, %cst {dimension_numbers = #tpu.dot_dimension_numbers<[1], [1], [0], [0], [0, 0, 1, 0], [], []>} : vector<128x128xf32>, vector<128x128xf32>, vector<128x128xf32> -> vector<128x128xf32>
    %c0_3 = arith.constant 0 : index
    %c0_4 = arith.constant 0 : index
    %20 = vector.load %arg7[%c0_3, %c0_4] : memref<128x1xf32, #tpu.memory_space<vmem>>, vector<128x1xf32>
    %21 = vector.broadcast %20 : vector<128x1xf32> to vector<128x128xf32>
    %22 = arith.mulf %19, %21 : vector<128x128xf32>
    %c0_5 = arith.constant 0 : index
    %c0_6 = arith.constant 0 : index
    %23 = vector.load %arg3[%c0_5, %c0_6] : memref<1x128xf32, #tpu.memory_space<vmem>>, vector<1x128xf32>
    %24 = vector.broadcast %23 : vector<1x128xf32> to vector<128x128xf32>
    %25 = arith.mulf %22, %24 : vector<128x128xf32>
    %c0_7 = arith.constant 0 : index
    %c0_8 = arith.constant 0 : index
    %26 = vector.load %arg6[%c0_7, %c0_8] : memref<128x1xi32, #tpu.memory_space<vmem>>, vector<128x1xi32>
    %c0_9 = arith.constant 0 : index
    %c0_10 = arith.constant 0 : index
    %27 = vector.load %arg2[%c0_9, %c0_10] : memref<1x128xi32, #tpu.memory_space<vmem>>, vector<1x128xi32>
    %28 = vector.broadcast %26 : vector<128x1xi32> to vector<128x128xi32>
    %29 = vector.broadcast %27 : vector<1x128xi32> to vector<128x128xi32>
    %30 = arith.cmpi eq, %28, %29 : vector<128x128xi32>
    %cst_11 = arith.constant dense<true> : vector<128x128xi1>
    %31 = arith.xori %15, %cst_11 : vector<128x128xi1>
    %32 = arith.andi %30, %31 : vector<128x128xi1>
    %33 = arith.andi %32, %12 : vector<128x128xi1>
    %cst_12 = arith.constant dense<true> : vector<128x128xi1>
    %34 = arith.xori %30, %cst_12 : vector<128x128xi1>
    %35 = arith.andi %34, %12 : vector<128x128xi1>
    %cst_13 = arith.constant 0.000000e+00 : f32
    %cst_14 = arith.constant 3.000000e+38 : f32
    %36 = arith.subf %cst_13, %cst_14 : f32
    %37 = vector.broadcast %36 : f32 to vector<128x128xf32>
    %38 = arith.select %35, %25, %37 : vector<128x128xi1>, vector<128x128xf32>
    %cst_15 = arith.constant dense<0xFF800000> : vector<128xf32>
    %39 = vector.multi_reduction <maximumf>, %38, %cst_15 [0] : vector<128x128xf32> to vector<128xf32>
    %40 = vector.shape_cast %39 : vector<128xf32> to vector<1x128xf32>
    %cst_16 = arith.constant 3.000000e+38 : f32
    %41 = vector.broadcast %cst_16 : f32 to vector<128x128xf32>
    %42 = arith.select %33, %25, %41 : vector<128x128xi1>, vector<128x128xf32>
    %cst_17 = arith.constant dense<0x7F800000> : vector<128xf32>
    %43 = vector.multi_reduction <minimumf>, %42, %cst_17 [0] : vector<128x128xf32> to vector<128xf32>
    %44 = vector.shape_cast %43 : vector<128xf32> to vector<1x128xf32>
    %cst_18 = arith.constant 1.000000e-01 : f32
    %45 = vector.broadcast %cst_18 : f32 to vector<128x128xf32>
    %46 = arith.subf %25, %45 : vector<128x128xf32>
    %47 = vector.broadcast %40 : vector<1x128xf32> to vector<128x128xf32>
    %48 = arith.cmpf olt, %46, %47 : vector<128x128xf32>
    %49 = arith.andi %33, %48 : vector<128x128xi1>
    %cst_19 = arith.constant 1.000000e-01 : f32
    %50 = vector.broadcast %cst_19 : f32 to vector<128x128xf32>
    %51 = arith.addf %25, %50 : vector<128x128xf32>
    %52 = vector.broadcast %44 : vector<1x128xf32> to vector<128x128xf32>
    %53 = arith.cmpf ogt, %51, %52 : vector<128x128xf32>
    %54 = arith.andi %35, %53 : vector<128x128xi1>
    %cst_20 = arith.constant 3.000000e+38 : f32
    %55 = vector.broadcast %cst_20 : f32 to vector<128x128xf32>
    %56 = arith.select %49, %25, %55 : vector<128x128xi1>, vector<128x128xf32>
    %c0_21 = arith.constant 0 : index
    %c0_22 = arith.constant 0 : index
    %57 = vector.load %arg9[%c0_21, %c0_22] : memref<128x128xf32, #tpu.memory_space<vmem>>, vector<128x128xf32>
    tpu.vector_store %arg9[%c0_21, %c0_22], %56 {strides = array<i32>} : memref<128x128xf32, #tpu.memory_space<vmem>>, vector<128x128xf32>,
    %cst_23 = arith.constant 0.000000e+00 : f32
    %cst_24 = arith.constant 3.000000e+38 : f32
    %58 = arith.subf %cst_23, %cst_24 : f32
    %59 = vector.broadcast %58 : f32 to vector<128x128xf32>
    %60 = arith.select %54, %25, %59 : vector<128x128xi1>, vector<128x128xf32>
    %c0_25 = arith.constant 0 : index
    %c0_26 = arith.constant 0 : index
    %61 = vector.load %arg10[%c0_25, %c0_26] : memref<128x128xf32, #tpu.memory_space<vmem>>, vector<128x128xf32>
    tpu.vector_store %arg10[%c0_25, %c0_26], %60 {strides = array<i32>} : memref<128x128xf32, #tpu.memory_space<vmem>>, vector<128x128xf32>,
    %cst_27 = arith.constant 0.000000e+00 : f32
    %62 = vector.broadcast %cst_27 : f32 to vector<8x128xf32>
    %c0_i32 = arith.constant 0 : i32
    %c8_i32_28 = arith.constant 8 : i32
    %63 = arith.muli %c0_i32, %c8_i32_28 : i32
    %64 = tpu.assume_multiple %63, 8 : i32
    %c0_29 = arith.constant 0 : index
    %c0_30 = arith.constant 0 : index
    %65 = vector.load %arg10[%c0_29, %c0_30] : memref<128x128xf32, #tpu.memory_space<vmem>>, vector<128x128xf32>
    %66 = vector.shape_cast %65 : vector<128x128xf32> to vector<16x8x128xf32>
    %c0_i32_31 = arith.constant 0 : i32
    %67 = arith.addi %64, %c0_i32_31 : i32
    %68 = arith.index_cast %67 : i32 to index
    %c0_32 = arith.constant 0 : index
    %69 = vector.load %arg9[%68, %c0_32] : memref<128x128xf32, #tpu.memory_space<vmem>>, vector<1x128xf32>
    %cst_33 = arith.constant 5.000000e-02 : f32
    %70 = vector.broadcast %cst_33 : f32 to vector<1x128xf32>
    %71 = arith.subf %70, %69 : vector<1x128xf32>
    %72 = vector.shape_cast %71 : vector<1x128xf32> to vector<1x1x128xf32>
    %73 = vector.broadcast %72 : vector<1x1x128xf32> to vector<16x8x128xf32>
    %74 = arith.addf %66, %73 : vector<16x8x128xf32>
    %cst_34 = arith.constant 0.000000e+00 : f32
    %75 = vector.broadcast %cst_34 : f32 to vector<16x8x128xf32>
    %76 = arith.maximumf %74, %75 : vector<16x8x128xf32>
    %cst_35 = arith.constant dense<0.000000e+00> : vector<8x128xf32>
    %77 = vector.multi_reduction <add>, %76, %cst_35 [0] : vector<16x8x128xf32> to vector<8x128xf32>
    %78 = arith.addf %62, %77 : vector<8x128xf32>
    %cst_36 = arith.constant 0.000000e+00 : f32
    %79 = vector.broadcast %cst_36 : f32 to vector<16x8x128xf32>
    %80 = arith.cmpf ogt, %76, %79 : vector<16x8x128xf32>
    %cst_37 = arith.constant 1.000000e+00 : f32
    %cst_38 = arith.constant 0.000000e+00 : f32
    %81 = vector.broadcast %cst_37 : f32 to vector<16x8x128xf32>
    %82 = vector.broadcast %cst_38 : f32 to vector<16x8x128xf32>
    %83 = arith.select %80, %81, %82 : vector<16x8x128xi1>, vector<16x8x128xf32>
    %cst_39 = arith.constant dense<0.000000e+00> : vector<8x128xf32>
    %84 = vector.multi_reduction <add>, %83, %cst_39 [0] : vector<16x8x128xf32> to vector<8x128xf32>
    %85 = arith.addf %62, %84 : vector<8x128xf32>
    %c1_i32 = arith.constant 1 : i32
    %86 = arith.addi %64, %c1_i32 : i32
    %87 = arith.index_cast %86 : i32 to index
    %c0_40 = arith.constant 0 : index
    %88 = vector.load %arg9[%87, %c0_40] : memref<128x128xf32, #tpu.memory_space<vmem>>, vector<1x128xf32>
    %cst_41 = arith.constant 5.000000e-02 : f32
    %89 = vector.broadcast %cst_41 : f32 to vector<1x128xf32>
    %90 = arith.subf %89, %88 : vector<1x128xf32>
    %91 = vector.shape_cast %90 : vector<1x128xf32> to vector<1x1x128xf32>
    %92 = vector.broadcast %91 : vector<1x1x128xf32> to vector<16x8x128xf32>
    %93 = arith.addf %66, %92 : vector<16x8x128xf32>
    %cst_42 = arith.constant 0.000000e+00 : f32
    %94 = vector.broadcast %cst_42 : f32 to vector<16x8x128xf32>
    %95 = arith.maximumf %93, %94 : vector<16x8x128xf32>
    %cst_43 = arith.constant dense<0.000000e+00> : vector<8x128xf32>
    %96 = vector.multi_reduction <add>, %95, %cst_43 [0] : vector<16x8x128xf32> to vector<8x128xf32>
    %97 = arith.addf %78, %96 : vector<8x128xf32>
    %cst_44 = arith.constant 0.000000e+00 : f32
    %98 = vector.broadcast %cst_44 : f32 to vector<16x8x128xf32>
    %99 = arith.cmpf ogt, %95, %98 : vector<16x8x128xf32>
    %cst_45 = arith.constant 1.000000e+00 : f32
    %cst_46 = arith.constant 0.000000e+00 : f32
    %100 = vector.broadcast %cst_45 : f32 to vector<16x8x128xf32>
    %101 = vector.broadcast %cst_46 : f32 to vector<16x8x128xf32>
    %102 = arith.select %99, %100, %101 : vector<16x8x128xi1>, vector<16x8x128xf32>
    %cst_47 = arith.constant dense<0.000000e+00> : vector<8x128xf32>
    %103 = vector.multi_reduction <add>, %102, %cst_47 [0] : vector<16x8x128xf32> to vector<8x128xf32>
    %104 = arith.addf %85, %103 : vector<8x128xf32>
    %c2_i32 = arith.constant 2 : i32
    %105 = arith.addi %64, %c2_i32 : i32
    %106 = arith.index_cast %105 : i32 to index
    %c0_48 = arith.constant 0 : index
    %107 = vector.load %arg9[%106, %c0_48] : memref<128x128xf32, #tpu.memory_space<vmem>>, vector<1x128xf32>
    %cst_49 = arith.constant 5.000000e-02 : f32
    %108 = vector.broadcast %cst_49 : f32 to vector<1x128xf32>
    %109 = arith.subf %108, %107 : vector<1x128xf32>
    %110 = vector.shape_cast %109 : vector<1x128xf32> to vector<1x1x128xf32>
    %111 = vector.broadcast %110 : vector<1x1x128xf32> to vector<16x8x128xf32>
    %112 = arith.addf %66, %111 : vector<16x8x128xf32>
    %cst_50 = arith.constant 0.000000e+00 : f32
    %113 = vector.broadcast %cst_50 : f32 to vector<16x8x128xf32>
    %114 = arith.maximumf %112, %113 : vector<16x8x128xf32>
    %cst_51 = arith.constant dense<0.000000e+00> : vector<8x128xf32>
    %115 = vector.multi_reduction <add>, %114, %cst_51 [0] : vector<16x8x128xf32> to vector<8x128xf32>
    %116 = arith.addf %97, %115 : vector<8x128xf32>
    %cst_52 = arith.constant 0.000000e+00 : f32
    %117 = vector.broadcast %cst_52 : f32 to vector<16x8x128xf32>
    %118 = arith.cmpf ogt, %114, %117 : vector<16x8x128xf32>
    %cst_53 = arith.constant 1.000000e+00 : f32
    %cst_54 = arith.constant 0.000000e+00 : f32
    %119 = vector.broadcast %cst_53 : f32 to vector<16x8x128xf32>
    %120 = vector.broadcast %cst_54 : f32 to vector<16x8x128xf32>
    %121 = arith.select %118, %119, %120 : vector<16x8x128xi1>, vector<16x8x128xf32>
    %cst_55 = arith.constant dense<0.000000e+00> : vector<8x128xf32>
    %122 = vector.multi_reduction <add>, %121, %cst_55 [0] : vector<16x8x128xf32> to vector<8x128xf32>
    %123 = arith.addf %104, %122 : vector<8x128xf32>
    %c3_i32 = arith.constant 3 : i32
    %124 = arith.addi %64, %c3_i32 : i32
    %125 = arith.index_cast %124 : i32 to index
    %c0_56 = arith.constant 0 : index
    %126 = vector.load %arg9[%125, %c0_56] : memref<128x128xf32, #tpu.memory_space<vmem>>, vector<1x128xf32>
    %cst_57 = arith.constant 5.000000e-02 : f32
    %127 = vector.broadcast %cst_57 : f32 to vector<1x128xf32>
    %128 = arith.subf %127, %126 : vector<1x128xf32>
    %129 = vector.shape_cast %128 : vector<1x128xf32> to vector<1x1x128xf32>
    %130 = vector.broadcast %129 : vector<1x1x128xf32> to vector<16x8x128xf32>
    %131 = arith.addf %66, %130 : vector<16x8x128xf32>
    %cst_58 = arith.constant 0.000000e+00 : f32
    %132 = vector.broadcast %cst_58 : f32 to vector<16x8x128xf32>
    %133 = arith.maximumf %131, %132 : vector<16x8x128xf32>
    %cst_59 = arith.constant dense<0.000000e+00> : vector<8x128xf32>
    %134 = vector.multi_reduction <add>, %133, %cst_59 [0] : vector<16x8x128xf32> to vector<8x128xf32>
    %135 = arith.addf %116, %134 : vector<8x128xf32>
    %cst_60 = arith.constant 0.000000e+00 : f32
    %136 = vector.broadcast %cst_60 : f32 to vector<16x8x128xf32>
    %137 = arith.cmpf ogt, %133, %136 : vector<16x8x128xf32>
    %cst_61 = arith.constant 1.000000e+00 : f32
    %cst_62 = arith.constant 0.000000e+00 : f32
    %138 = vector.broadcast %cst_61 : f32 to vector<16x8x128xf32>
    %139 = vector.broadcast %cst_62 : f32 to vector<16x8x128xf32>
    %140 = arith.select %137, %138, %139 : vector<16x8x128xi1>, vector<16x8x128xf32>
    %cst_63 = arith.constant dense<0.000000e+00> : vector<8x128xf32>
    %141 = vector.multi_reduction <add>, %140, %cst_63 [0] : vector<16x8x128xf32> to vector<8x128xf32>
    %142 = arith.addf %123, %141 : vector<8x128xf32>
    %c4_i32 = arith.constant 4 : i32
    %143 = arith.addi %64, %c4_i32 : i32
    %144 = arith.index_cast %143 : i32 to index
    %c0_64 = arith.constant 0 : index
    %145 = vector.load %arg9[%144, %c0_64] : memref<128x128xf32, #tpu.memory_space<vmem>>, vector<1x128xf32>
    %cst_65 = arith.constant 5.000000e-02 : f32
    %146 = vector.broadcast %cst_65 : f32 to vector<1x128xf32>
    %147 = arith.subf %146, %145 : vector<1x128xf32>
    %148 = vector.shape_cast %147 : vector<1x128xf32> to vector<1x1x128xf32>
    %149 = vector.broadcast %148 : vector<1x1x128xf32> to vector<16x8x128xf32>
    %150 = arith.addf %66, %149 : vector<16x8x128xf32>
    %cst_66 = arith.constant 0.000000e+00 : f32
    %151 = vector.broadcast %cst_66 : f32 to vector<16x8x128xf32>
    %152 = arith.maximumf %150, %151 : vector<16x8x128xf32>
    %cst_67 = arith.constant dense<0.000000e+00> : vector<8x128xf32>
    %153 = vector.multi_reduction <add>, %152, %cst_67 [0] : vector<16x8x128xf32> to vector<8x128xf32>
    %154 = arith.addf %135, %153 : vector<8x128xf32>
    %cst_68 = arith.constant 0.000000e+00 : f32
    %155 = vector.broadcast %cst_68 : f32 to vector<16x8x128xf32>
    %156 = arith.cmpf ogt, %152, %155 : vector<16x8x128xf32>
    %cst_69 = arith.constant 1.000000e+00 : f32
    %cst_70 = arith.constant 0.000000e+00 : f32
    %157 = vector.broadcast %cst_69 : f32 to vector<16x8x128xf32>
    %158 = vector.broadcast %cst_70 : f32 to vector<16x8x128xf32>
    %159 = arith.select %156, %157, %158 : vector<16x8x128xi1>, vector<16x8x128xf32>
    %cst_71 = arith.constant dense<0.000000e+00> : vector<8x128xf32>
    %160 = vector.multi_reduction <add>, %159, %cst_71 [0] : vector<16x8x128xf32> to vector<8x128xf32>
    %161 = arith.addf %142, %160 : vector<8x128xf32>
    %c5_i32 = arith.constant 5 : i32
    %162 = arith.addi %64, %c5_i32 : i32
    %163 = arith.index_cast %162 : i32 to index
    %c0_72 = arith.constant 0 : index
    %164 = vector.load %arg9[%163, %c0_72] : memref<128x128xf32, #tpu.memory_space<vmem>>, vector<1x128xf32>
    %cst_73 = arith.constant 5.000000e-02 : f32
    %165 = vector.broadcast %cst_73 : f32 to vector<1x128xf32>
    %166 = arith.subf %165, %164 : vector<1x128xf32>
    %167 = vector.shape_cast %166 : vector<1x128xf32> to vector<1x1x128xf32>
    %168 = vector.broadcast %167 : vector<1x1x128xf32> to vector<16x8x128xf32>
    %169 = arith.addf %66, %168 : vector<16x8x128xf32>
    %cst_74 = arith.constant 0.000000e+00 : f32
    %170 = vector.broadcast %cst_74 : f32 to vector<16x8x128xf32>
    %171 = arith.maximumf %169, %170 : vector<16x8x128xf32>
    %cst_75 = arith.constant dense<0.000000e+00> : vector<8x128xf32>
    %172 = vector.multi_reduction <add>, %171, %cst_75 [0] : vector<16x8x128xf32> to vector<8x128xf32>
    %173 = arith.addf %154, %172 : vector<8x128xf32>
    %cst_76 = arith.constant 0.000000e+00 : f32
    %174 = vector.broadcast %cst_76 : f32 to vector<16x8x128xf32>
    %175 = arith.cmpf ogt, %171, %174 : vector<16x8x128xf32>
    %cst_77 = arith.constant 1.000000e+00 : f32
    %cst_78 = arith.constant 0.000000e+00 : f32
    %176 = vector.broadcast %cst_77 : f32 to vector<16x8x128xf32>
    %177 = vector.broadcast %cst_78 : f32 to vector<16x8x128xf32>
    %178 = arith.select %175, %176, %177 : vector<16x8x128xi1>, vector<16x8x128xf32>
    %cst_79 = arith.constant dense<0.000000e+00> : vector<8x128xf32>
    %179 = vector.multi_reduction <add>, %178, %cst_79 [0] : vector<16x8x128xf32> to vector<8x128xf32>
    %180 = arith.addf %161, %179 : vector<8x128xf32>
    %c6_i32 = arith.constant 6 : i32
    %181 = arith.addi %64, %c6_i32 : i32
    %182 = arith.index_cast %181 : i32 to index
    %c0_80 = arith.constant 0 : index
    %183 = vector.load %arg9[%182, %c0_80] : memref<128x128xf32, #tpu.memory_space<vmem>>, vector<1x128xf32>
    %cst_81 = arith.constant 5.000000e-02 : f32
    %184 = vector.broadcast %cst_81 : f32 to vector<1x128xf32>
    %185 = arith.subf %184, %183 : vector<1x128xf32>
    %186 = vector.shape_cast %185 : vector<1x128xf32> to vector<1x1x128xf32>
    %187 = vector.broadcast %186 : vector<1x1x128xf32> to vector<16x8x128xf32>
    %188 = arith.addf %66, %187 : vector<16x8x128xf32>
    %cst_82 = arith.constant 0.000000e+00 : f32
    %189 = vector.broadcast %cst_82 : f32 to vector<16x8x128xf32>
    %190 = arith.maximumf %188, %189 : vector<16x8x128xf32>
    %cst_83 = arith.constant dense<0.000000e+00> : vector<8x128xf32>
    %191 = vector.multi_reduction <add>, %190, %cst_83 [0] : vector<16x8x128xf32> to vector<8x128xf32>
    %192 = arith.addf %173, %191 : vector<8x128xf32>
    %cst_84 = arith.constant 0.000000e+00 : f32
    %193 = vector.broadcast %cst_84 : f32 to vector<16x8x128xf32>
    %194 = arith.cmpf ogt, %190, %193 : vector<16x8x128xf32>
    %cst_85 = arith.constant 1.000000e+00 : f32
    %cst_86 = arith.constant 0.000000e+00 : f32
    %195 = vector.broadcast %cst_85 : f32 to vector<16x8x128xf32>
    %196 = vector.broadcast %cst_86 : f32 to vector<16x8x128xf32>
    %197 = arith.select %194, %195, %196 : vector<16x8x128xi1>, vector<16x8x128xf32>
    %cst_87 = arith.constant dense<0.000000e+00> : vector<8x128xf32>
    %198 = vector.multi_reduction <add>, %197, %cst_87 [0] : vector<16x8x128xf32> to vector<8x128xf32>
    %199 = arith.addf %180, %198 : vector<8x128xf32>
    %c7_i32 = arith.constant 7 : i32
    %200 = arith.addi %64, %c7_i32 : i32
    %201 = arith.index_cast %200 : i32 to index
    %c0_88 = arith.constant 0 : index
    %202 = vector.load %arg9[%201, %c0_88] : memref<128x128xf32, #tpu.memory_space<vmem>>, vector<1x128xf32>
    %cst_89 = arith.constant 5.000000e-02 : f32
    %203 = vector.broadcast %cst_89 : f32 to vector<1x128xf32>
    %204 = arith.subf %203, %202 : vector<1x128xf32>
    %205 = vector.shape_cast %204 : vector<1x128xf32> to vector<1x1x128xf32>
    %206 = vector.broadcast %205 : vector<1x1x128xf32> to vector<16x8x128xf32>
    %207 = arith.addf %66, %206 : vector<16x8x128xf32>
    %cst_90 = arith.constant 0.000000e+00 : f32
    %208 = vector.broadcast %cst_90 : f32 to vector<16x8x128xf32>
    %209 = arith.maximumf %207, %208 : vector<16x8x128xf32>
    %cst_91 = arith.constant dense<0.000000e+00> : vector<8x128xf32>
    %210 = vector.multi_reduction <add>, %209, %cst_91 [0] : vector<16x8x128xf32> to vector<8x128xf32>
    %211 = arith.addf %192, %210 : vector<8x128xf32>
    %cst_92 = arith.constant 0.000000e+00 : f32
    %212 = vector.broadcast %cst_92 : f32 to vector<16x8x128xf32>
    %213 = arith.cmpf ogt, %209, %212 : vector<16x8x128xf32>
    %cst_93 = arith.constant 1.000000e+00 : f32
    %cst_94 = arith.constant 0.000000e+00 : f32
    %214 = vector.broadcast %cst_93 : f32 to vector<16x8x128xf32>
    %215 = vector.broadcast %cst_94 : f32 to vector<16x8x128xf32>
    %216 = arith.select %213, %214, %215 : vector<16x8x128xi1>, vector<16x8x128xf32>
    %cst_95 = arith.constant dense<0.000000e+00> : vector<8x128xf32>
    %217 = vector.multi_reduction <add>, %216, %cst_95 [0] : vector<16x8x128xf32> to vector<8x128xf32>
    %218 = arith.addf %199, %217 : vector<8x128xf32>
    %c1_i32_96 = arith.constant 1 : i32
    %219 = vector.shape_cast %211 : vector<8x128xf32> to vector<1x8x128xf32>
    %cst_97 = arith.constant dense<0.000000e+00> : vector<1xf32>
    %220 = vector.multi_reduction <add>, %219, %cst_97 [1, 2] : vector<1x8x128xf32> to vector<1xf32>
    %221 = vector.shape_cast %220 : vector<1xf32> to vector<1x1x1xf32>
    %222 = vector.extract %221[0, 0, 0] : f32 from vector<1x1x1xf32>
    %223 = vector.shape_cast %218 : vector<8x128xf32> to vector<1x8x128xf32>
    %cst_98 = arith.constant dense<0.000000e+00> : vector<1xf32>
    %224 = vector.multi_reduction <add>, %223, %cst_98 [1, 2] : vector<1x8x128xf32> to vector<1xf32>
    %225 = vector.shape_cast %224 : vector<1xf32> to vector<1x1x1xf32>
    %226 = vector.extract %225[0, 0, 0] : f32 from vector<1x1x1xf32>
    %c0_99 = arith.constant 0 : index
    %c0_100 = arith.constant 0 : index
    %227 = vector.load %arg1[%c0_99, %c0_100] : memref<8x128xf32, #tpu.memory_space<vmem>>, vector<8x128xf32>
    %228 = tpu.iota {dimensions = array<i32: 0>} : vector<8x128xi32>
    %c5_i32_101 = arith.constant 5 : i32
    %229 = vector.broadcast %c5_i32_101 : i32 to vector<8x128xi32>
    %230 = arith.cmpi slt, %228, %229 : vector<8x128xi32>
    %cst_102 = arith.constant 0.000000e+00 : f32
    %cst_103 = arith.constant 3.000000e+38 : f32
    %231 = arith.subf %cst_102, %cst_103 : f32
    %232 = vector.broadcast %231 : f32 to vector<8x128xf32>
    %233 = arith.select %230, %227, %232 : vector<8x128xi1>, vector<8x128xf32>
    %cst_104 = arith.constant dense<0xFF800000> : vector<128xf32>
    %234 = vector.multi_reduction <maximumf>, %233, %cst_104 [0] : vector<8x128xf32> to vector<128xf32>
    %235 = vector.shape_cast %234 : vector<128xf32> to vector<1x128xf32>
    %236 = vector.broadcast %235 : vector<1x128xf32> to vector<8x128xf32>
    %237 = arith.subf %233, %236 : vector<8x128xf32>
    %238 = math.exp %237 : vector<8x128xf32>
    %cst_105 = arith.constant dense<0.000000e+00> : vector<128xf32>
    %239 = vector.multi_reduction <add>, %238, %cst_105 [0] : vector<8x128xf32> to vector<128xf32>
    %240 = vector.shape_cast %239 : vector<128xf32> to vector<1x128xf32>
    %241 = math.log %240 : vector<1x128xf32>
    %242 = arith.addf %235, %241 : vector<1x128xf32>
    %c0_106 = arith.constant 0 : index
    %c0_107 = arith.constant 0 : index
    %243 = vector.load %arg2[%c0_106, %c0_107] : memref<1x128xi32, #tpu.memory_space<vmem>>, vector<1x128xi32>
    %244 = vector.broadcast %243 : vector<1x128xi32> to vector<8x128xi32>
    %245 = arith.cmpi eq, %228, %244 : vector<8x128xi32>
    %cst_108 = arith.constant 0.000000e+00 : f32
    %246 = vector.broadcast %cst_108 : f32 to vector<8x128xf32>
    %247 = arith.select %245, %233, %246 : vector<8x128xi1>, vector<8x128xf32>
    %cst_109 = arith.constant dense<0.000000e+00> : vector<128xf32>
    %248 = vector.multi_reduction <add>, %247, %cst_109 [0] : vector<8x128xf32> to vector<128xf32>
    %249 = vector.shape_cast %248 : vector<128xf32> to vector<1x128xf32>
    %250 = arith.subf %242, %249 : vector<1x128xf32>
    %cst_110 = arith.constant 0.000000e+00 : f32
    %251 = vector.broadcast %cst_110 : f32 to vector<1x128xf32>
    %252 = arith.select %9, %250, %251 : vector<1x128xi1>, vector<1x128xf32>
    %253 = vector.shape_cast %252 : vector<1x128xf32> to vector<1x1x128xf32>
    %cst_111 = arith.constant dense<0.000000e+00> : vector<1xf32>
    %254 = vector.multi_reduction <add>, %253, %cst_111 [1, 2] : vector<1x1x128xf32> to vector<1xf32>
    %255 = vector.shape_cast %254 : vector<1xf32> to vector<1x1x1xf32>
    %256 = vector.extract %255[0, 0, 0] : f32 from vector<1x1x1xf32>
    %c0_112 = arith.constant 0 : index
    %c0_113 = arith.constant 0 : index
    %257 = vector.load %arg4[%c0_112, %c0_113] : memref<1x128xf32, #tpu.memory_space<vmem>>, vector<1x128xf32>
    %cst_114 = arith.constant 0.000000e+00 : f32
    %258 = vector.broadcast %cst_114 : f32 to vector<1x128xf32>
    %259 = arith.select %9, %257, %258 : vector<1x128xi1>, vector<1x128xf32>
    %260 = vector.shape_cast %259 : vector<1x128xf32> to vector<1x1x128xf32>
    %cst_115 = arith.constant dense<0.000000e+00> : vector<1xf32>
    %261 = vector.multi_reduction <add>, %260, %cst_115 [1, 2] : vector<1x1x128xf32> to vector<1xf32>
    %262 = vector.shape_cast %261 : vector<1xf32> to vector<1x1x1xf32>
    %263 = vector.extract %262[0, 0, 0] : f32 from vector<1x1x1xf32>
    %264 = tpu.iota {dimensions = array<i32: 1>} : vector<8x128xi32>
    %c0_i32_116 = arith.constant 0 : i32
    %265 = vector.broadcast %c0_i32_116 : i32 to vector<8x128xi32>
    %266 = arith.cmpi eq, %264, %265 : vector<8x128xi32>
    %cst_117 = arith.constant 0.000000e+00 : f32
    %267 = vector.broadcast %256 : f32 to vector<8x128xf32>
    %268 = vector.broadcast %cst_117 : f32 to vector<8x128xf32>
    %269 = arith.select %266, %267, %268 : vector<8x128xi1>, vector<8x128xf32>
    %c1_i32_118 = arith.constant 1 : i32
    %270 = vector.broadcast %c1_i32_118 : i32 to vector<8x128xi32>
    %271 = arith.cmpi eq, %264, %270 : vector<8x128xi32>
    %cst_119 = arith.constant 0.000000e+00 : f32
    %272 = vector.broadcast %263 : f32 to vector<8x128xf32>
    %273 = vector.broadcast %cst_119 : f32 to vector<8x128xf32>
    %274 = arith.select %271, %272, %273 : vector<8x128xi1>, vector<8x128xf32>
    %275 = arith.addf %269, %274 : vector<8x128xf32>
    %c2_i32_120 = arith.constant 2 : i32
    %276 = vector.broadcast %c2_i32_120 : i32 to vector<8x128xi32>
    %277 = arith.cmpi eq, %264, %276 : vector<8x128xi32>
    %cst_121 = arith.constant 0.000000e+00 : f32
    %278 = vector.broadcast %222 : f32 to vector<8x128xf32>
    %279 = vector.broadcast %cst_121 : f32 to vector<8x128xf32>
    %280 = arith.select %277, %278, %279 : vector<8x128xi1>, vector<8x128xf32>
    %281 = arith.addf %275, %280 : vector<8x128xf32>
    %c3_i32_122 = arith.constant 3 : i32
    %282 = vector.broadcast %c3_i32_122 : i32 to vector<8x128xi32>
    %283 = arith.cmpi eq, %264, %282 : vector<8x128xi32>
    %cst_123 = arith.constant 0.000000e+00 : f32
    %284 = vector.broadcast %226 : f32 to vector<8x128xf32>
    %285 = vector.broadcast %cst_123 : f32 to vector<8x128xf32>
    %286 = arith.select %283, %284, %285 : vector<8x128xi1>, vector<8x128xf32>
    %287 = arith.addf %281, %286 : vector<8x128xf32>
    %288 = vector.shape_cast %287 : vector<8x128xf32> to vector<1x8x128xf32>
    %c0_124 = arith.constant 0 : index
    %c0_125 = arith.constant 0 : index
    %c0_126 = arith.constant 0 : index
    %289 = vector.load %arg8[%c0_124, %c0_125, %c0_126] : memref<1x8x128xf32, #tpu.memory_space<vmem>>, vector<1x8x128xf32>
    tpu.vector_store %arg8[%c0_124, %c0_125, %c0_126], %288 {strides = array<i32>} : memref<1x8x128xf32, #tpu.memory_space<vmem>>, vector<1x8x128xf32>,
    return
  }
  func.func @transform_0(%arg0: i32) -> (i32, i32) {
    %c0_i32 = arith.constant 0 : i32
    %c0_i32_0 = arith.constant 0 : i32
    return %c0_i32, %arg0 : i32, i32
  }
  func.func @transform_1(%arg0: i32) -> (i32, i32) {
    %c0_i32 = arith.constant 0 : i32
    %c0_i32_0 = arith.constant 0 : i32
    return %c0_i32, %arg0 : i32, i32
  }
  func.func @transform_2(%arg0: i32) -> (i32, i32) {
    %c0_i32 = arith.constant 0 : i32
    %c0_i32_0 = arith.constant 0 : i32
    return %c0_i32, %arg0 : i32, i32
  }
  func.func @transform_3(%arg0: i32) -> (i32, i32) {
    %c0_i32 = arith.constant 0 : i32
    %c0_i32_0 = arith.constant 0 : i32
    return %c0_i32, %arg0 : i32, i32
  }
  func.func @transform_4(%arg0: i32) -> (i32, i32) {
    %c0_i32 = arith.constant 0 : i32
    %c0_i32_0 = arith.constant 0 : i32
    %c0_i32_1 = arith.constant 0 : i32
    return %c0_i32, %c0_i32_0 : i32, i32
  }
  func.func @transform_5(%arg0: i32) -> (i32, i32) {
    %c0_i32 = arith.constant 0 : i32
    %c0_i32_0 = arith.constant 0 : i32
    %c0_i32_1 = arith.constant 0 : i32
    return %c0_i32, %c0_i32_0 : i32, i32
  }
  func.func @transform_6(%arg0: i32) -> (i32, i32) {
    %c0_i32 = arith.constant 0 : i32
    %c0_i32_0 = arith.constant 0 : i32
    %c0_i32_1 = arith.constant 0 : i32
    return %c0_i32, %c0_i32_0 : i32, i32
  }
  func.func @transform_7(%arg0: i32) -> (i32, i32, i32) {
    %c0_i32 = arith.constant 0 : i32
    %c0_i32_0 = arith.constant 0 : i32
    %c0_i32_1 = arith.constant 0 : i32
    return %arg0, %c0_i32, %c0_i32_0 : i32, i32, i32
  }
}

</mosaic_0001>

<llo_original>
// kernel: tpu_custom_call.1
$region0: #{tpu_custom_call.1}
  #allocation0 [shape = 'u32[]', space=smem, size = 0x4, offset = 0x4, fixed_abs, tag = 'smem constant byte address 0x4 - core index']
  #allocation1 [shape = 'u32[144,128]{1,0:T(1,128)}', space=vmem, size = 0x12000, scoped, tag = 'internal scratch']
  #allocation2 [shape = 'f32[128,128]{1,0:T(8,128)}', space=vmem, size = 0x10000, scoped, tag = 'scratch operand']
  #allocation3 [shape = 'f32[128,128]{1,0:T(8,128)}', space=vmem, size = 0x10000, scoped, tag = 'scratch operand']
  %s0 = inlined_call_operand.vmem [shape: f32[8,128], index: 0, kind: input, shape index: {}]
  %s1 = inlined_call_operand.vmem [shape: s32[1,128], index: 1, kind: input, shape index: {}]
  %s2 = inlined_call_operand.vmem [shape: f32[1,128], index: 2, kind: input, shape index: {}]
  %s3 = inlined_call_operand.vmem [shape: f32[1,128], index: 3, kind: input, shape index: {}]
  %s4 = inlined_call_operand.vmem [shape: f32[128,128], index: 4, kind: input, shape index: {}]
  %s5 = inlined_call_operand.vmem [shape: s32[128,1], index: 5, kind: input, shape index: {}]
  %s6 = inlined_call_operand.vmem [shape: f32[128,1], index: 6, kind: input, shape index: {}]
  %s7 = inlined_call_operand.hbm [shape: f32[1,8,128], index: 7, kind: output, shape index: {}]
  %s8 = sld [smem:[#allocation0]]
  $region38: #{tpu_custom_call.1} parent=0
    _
  %s10 = ssub.s32 1, %s8
  %s11 = scalar_select 0, %s10, %s8
  $region1: #{tpu_custom_call.1} parent=0
    #allocation4 [shape = 'u8[4096]{0}', space=vmem, size = 0x1000, scoped, tag = 'output window, operand 0, single buffered']
    #allocation5 [shape = 's32[1]{0}', space=sflag, size = 0x4, scoped, tag = 'scoped memory for tpu_custom_call.1']
    %12 = vsyncpa [#allocation5], 0
    // Predicated region
    $region2: #{tpu_custom_call.1} parent=1 // pred_check
      _
    $region3: #{tpu_custom_call.1} parent=1 // pred_check_branch
      %14 = sbr.rel (0) target = $region5
    $region4: #{tpu_custom_call.1} parent=1 // pred_region
      _
    $region5: #{tpu_custom_call.1} parent=1 // pred_fallthru
      _
    // Predicated region
    $region6: #{tpu_custom_call.1} parent=1 // pred_check
      _
    $region7: #{tpu_custom_call.1} parent=1 // pred_check_branch
      %16 = sbr.rel (0) target = $region9
    $region8: #{tpu_custom_call.1} parent=1 // pred_region
      _
    $region9: #{tpu_custom_call.1} parent=1 // pred_fallthru
      _
    // Predicated region
    $region10: #{tpu_custom_call.1} parent=1 // pred_check
      _
    $region11: #{tpu_custom_call.1} parent=1 // pred_check_branch
      %18 = sbr.rel (0) target = $region13
    $region12: #{tpu_custom_call.1} parent=1 // pred_region
      _
    $region13: #{tpu_custom_call.1} parent=1 // pred_fallthru
      _
    // Predicated region
    $region14: #{tpu_custom_call.1} parent=1 // pred_check
      _
    $region15: #{tpu_custom_call.1} parent=1 // pred_check_branch
      %20 = sbr.rel (0) target = $region17
    $region16: #{tpu_custom_call.1} parent=1 // pred_region
      _
    $region17: #{tpu_custom_call.1} parent=1 // pred_fallthru
      _
    // Predicated region
    $region18: #{tpu_custom_call.1} parent=1 // pred_check
      _
    $region19: #{tpu_custom_call.1} parent=1 // pred_check_branch
      %22 = sbr.rel (0) target = $region21
    $region20: #{tpu_custom_call.1} parent=1 // pred_region
      _
    $region21: #{tpu_custom_call.1} parent=1 // pred_fallthru
      _
    // Predicated region
    $region22: #{tpu_custom_call.1} parent=1 // pred_check
      _
    $region23: #{tpu_custom_call.1} parent=1 // pred_check_branch
      %24 = sbr.rel (0) target = $region25
    $region24: #{tpu_custom_call.1} parent=1 // pred_region
      _
    $region25: #{tpu_custom_call.1} parent=1 // pred_fallthru
      _
    // Predicated region
    $region26: #{tpu_custom_call.1} parent=1 // pred_check
      _
    $region27: #{tpu_custom_call.1} parent=1 // pred_check_branch
      %26 = sbr.rel (0) target = $region29
    $region28: #{tpu_custom_call.1} parent=1 // pred_region
      _
    $region29: #{tpu_custom_call.1} parent=1 // pred_fallthru
      _
    %s27 = smul.u32 0, 128
    %v28 = vlaneseq
    %v29 = vshrl.u32 %v28, 7
    %v30 = vadd.s32 %v29, 8
    %v31 = vadd.s32 %v29, 16
    %v32 = vadd.s32 %v29, 24
    %v33 = vadd.s32 %v29, 32
    %v34 = vadd.s32 %v29, 40
    %v35 = vadd.s32 %v29, 48
    %v36 = vadd.s32 %v29, 56
    %v37 = vadd.s32 %v29, 64
    %v38 = vadd.s32 %v29, 72
    %v39 = vadd.s32 %v29, 80
    %v40 = vadd.s32 %v29, 88
    %v41 = vadd.s32 %v29, 96
    %v42 = vadd.s32 %v29, 104
    %v43 = vadd.s32 %v29, 112
    %v44 = vadd.s32 %v29, 120
    %v45 = vlaneseq
    %v46 = vand.u32 %v45, 127
    %v47 = vstv %s27
    %v48 = vadd.s32 %v47, %v46
    %vm49 = vcmp.lt.s32.totalorder %v29, 8
    %vm50 = vcmp.lt.s32.totalorder %v30, 8
    %vm51 = vcmp.lt.s32.totalorder %v31, 8
    %vm52 = vcmp.lt.s32.totalorder %v32, 8
    %vm53 = vcmp.lt.s32.totalorder %v33, 8
    %vm54 = vcmp.lt.s32.totalorder %v34, 8
    %vm55 = vcmp.lt.s32.totalorder %v35, 8
    %vm56 = vcmp.lt.s32.totalorder %v36, 8
    %vm57 = vcmp.lt.s32.totalorder %v37, 8
    %vm58 = vcmp.lt.s32.totalorder %v38, 8
    %vm59 = vcmp.lt.s32.totalorder %v39, 8
    %vm60 = vcmp.lt.s32.totalorder %v40, 8
    %vm61 = vcmp.lt.s32.totalorder %v41, 8
    %vm62 = vcmp.lt.s32.totalorder %v42, 8
    %vm63 = vcmp.lt.s32.totalorder %v43, 8
    %vm64 = vcmp.lt.s32.totalorder %v44, 8
    %vm65 = vcmp.lt.s32.totalorder %v48, 8
    %v66 = vsel %vm49, 1, 0
    %v67 = vsel %vm50, 1, 0
    %v68 = vsel %vm51, 1, 0
    %v69 = vsel %vm52, 1, 0
    %v70 = vsel %vm53, 1, 0
    %v71 = vsel %vm54, 1, 0
    %v72 = vsel %vm55, 1, 0
    %v73 = vsel %vm56, 1, 0
    %v74 = vsel %vm57, 1, 0
    %v75 = vsel %vm58, 1, 0
    %v76 = vsel %vm59, 1, 0
    %v77 = vsel %vm60, 1, 0
    %v78 = vsel %vm61, 1, 0
    %v79 = vsel %vm62, 1, 0
    %v80 = vsel %vm63, 1, 0
    %v81 = vsel %vm64, 1, 0
    %vm82 = vcmp.eq.s32.totalorder %v66, 1
    %vm83 = vcmp.eq.s32.totalorder %v67, 1
    %vm84 = vcmp.eq.s32.totalorder %v68, 1
    %vm85 = vcmp.eq.s32.totalorder %v69, 1
    %vm86 = vcmp.eq.s32.totalorder %v70, 1
    %vm87 = vcmp.eq.s32.totalorder %v71, 1
    %vm88 = vcmp.eq.s32.totalorder %v72, 1
    %vm89 = vcmp.eq.s32.totalorder %v73, 1
    %vm90 = vcmp.eq.s32.totalorder %v74, 1
    %vm91 = vcmp.eq.s32.totalorder %v75, 1
    %vm92 = vcmp.eq.s32.totalorder %v76, 1
    %vm93 = vcmp.eq.s32.totalorder %v77, 1
    %vm94 = vcmp.eq.s32.totalorder %v78, 1
    %vm95 = vcmp.eq.s32.totalorder %v79, 1
    %vm96 = vcmp.eq.s32.totalorder %v80, 1
    %vm97 = vcmp.eq.s32.totalorder %v81, 1
    %v98 = vsel %vm65, 1, 0
    %vm99 = vcmp.eq.s32.totalorder %v98, 1
    %vm100 = vmand %vm82, %vm99
    %vm101 = vmand %vm83, %vm99
    %vm102 = vmand %vm84, %vm99
    %vm103 = vmand %vm85, %vm99
    %vm104 = vmand %vm86, %vm99
    %vm105 = vmand %vm87, %vm99
    %vm106 = vmand %vm88, %vm99
    %vm107 = vmand %vm89, %vm99
    %vm108 = vmand %vm90, %vm99
    %vm109 = vmand %vm91, %vm99
    %vm110 = vmand %vm92, %vm99
    %vm111 = vmand %vm93, %vm99
    %vm112 = vmand %vm94, %vm99
    %vm113 = vmand %vm95, %vm99
    %vm114 = vmand %vm96, %vm99
    %vm115 = vmand %vm97, %vm99
    %vm116 = vcmp.eq.s32.totalorder %v29, %v48
    %vm117 = vcmp.eq.s32.totalorder %v30, %v48
    %vm118 = vcmp.eq.s32.totalorder %v31, %v48
    %vm119 = vcmp.eq.s32.totalorder %v32, %v48
    %vm120 = vcmp.eq.s32.totalorder %v33, %v48
    %vm121 = vcmp.eq.s32.totalorder %v34, %v48
    %vm122 = vcmp.eq.s32.totalorder %v35, %v48
    %vm123 = vcmp.eq.s32.totalorder %v36, %v48
    %vm124 = vcmp.eq.s32.totalorder %v37, %v48
    %vm125 = vcmp.eq.s32.totalorder %v38, %v48
    %vm126 = vcmp.eq.s32.totalorder %v39, %v48
    %vm127 = vcmp.eq.s32.totalorder %v40, %v48
    %vm128 = vcmp.eq.s32.totalorder %v41, %v48
    %vm129 = vcmp.eq.s32.totalorder %v42, %v48
    %vm130 = vcmp.eq.s32.totalorder %v43, %v48
    %vm131 = vcmp.eq.s32.totalorder %v44, %v48
    %v132 = vld [vmem:[%s4] sm:$0xff]
    %v133 = vld [vmem:[%s4 + $0x8] sm:$0xff]
    %v134 = vld [vmem:[%s4 + $0x10] sm:$0xff]
    %v135 = vld [vmem:[%s4 + $0x18] sm:$0xff]
    %v136 = vld [vmem:[%s4 + $0x20] sm:$0xff]
    %v137 = vld [vmem:[%s4 + $0x28] sm:$0xff]
    %v138 = vld [vmem:[%s4 + $0x30] sm:$0xff]
    %v139 = vld [vmem:[%s4 + $0x38] sm:$0xff]
    %v140 = vld [vmem:[%s4 + $0x40] sm:$0xff]
    %v141 = vld [vmem:[%s4 + $0x48] sm:$0xff]
    %v142 = vld [vmem:[%s4 + $0x50] sm:$0xff]
    %v143 = vld [vmem:[%s4 + $0x58] sm:$0xff]
    %v144 = vld [vmem:[%s4 + $0x60] sm:$0xff]
    %v145 = vld [vmem:[%s4 + $0x68] sm:$0xff]
    %v146 = vld [vmem:[%s4 + $0x70] sm:$0xff]
    %v147 = vld [vmem:[%s4 + $0x78] sm:$0xff]
    %s148 = scalar_lea.vmem %s4, %s27
    %v149 = vld [vmem:[%s148] sm:$0xff]
    %v150 = vld [vmem:[%s148 + $0x8] sm:$0xff]
    %v151 = vld [vmem:[%s148 + $0x10] sm:$0xff]
    %v152 = vld [vmem:[%s148 + $0x18] sm:$0xff]
    %v153 = vld [vmem:[%s148 + $0x20] sm:$0xff]
    %v154 = vld [vmem:[%s148 + $0x28] sm:$0xff]
    %v155 = vld [vmem:[%s148 + $0x30] sm:$0xff]
    %v156 = vld [vmem:[%s148 + $0x38] sm:$0xff]
    %v157 = vld [vmem:[%s148 + $0x40] sm:$0xff]
    %v158 = vld [vmem:[%s148 + $0x48] sm:$0xff]
    %v159 = vld [vmem:[%s148 + $0x50] sm:$0xff]
    %v160 = vld [vmem:[%s148 + $0x58] sm:$0xff]
    %v161 = vld [vmem:[%s148 + $0x60] sm:$0xff]
    %v162 = vld [vmem:[%s148 + $0x68] sm:$0xff]
    %v163 = vld [vmem:[%s148 + $0x70] sm:$0xff]
    %v164 = vld [vmem:[%s148 + $0x78] sm:$0xff]
    %165 = vmatprep.subr.mxu0 0.0
    %166 = vmatpush1.xpose.msra.mxu0 %v149
    %167 = vmatprep.subr.mxu0 0.0
    %168 = vmatpush1.xpose.msra.mxu0 %v150
    %169 = vmatprep.subr.mxu0 0.0
    %170 = vmatpush1.xpose.msra.mxu0 %v151
    %171 = vmatprep.subr.mxu0 0.0
    %172 = vmatpush1.xpose.msra.mxu0 %v152
    %173 = vmatprep.subr.mxu0 0.0
    %174 = vmatpush1.xpose.msra.mxu0 %v153
    %175 = vmatprep.subr.mxu0 0.0
    %176 = vmatpush1.xpose.msra.mxu0 %v154
    %177 = vmatprep.subr.mxu0 0.0
    %178 = vmatpush1.xpose.msra.mxu0 %v155
    %179 = vmatprep.subr.mxu0 0.0
    %180 = vmatpush1.xpose.msra.mxu0 %v156
    %181 = vmatprep.subr.mxu0 0.0
    %182 = vmatpush1.xpose.msra.mxu0 %v157
    %183 = vmatprep.subr.mxu0 0.0
    %184 = vmatpush1.xpose.msra.mxu0 %v158
    %185 = vmatprep.subr.mxu0 0.0
    %186 = vmatpush1.xpose.msra.mxu0 %v159
    %187 = vmatprep.subr.mxu0 0.0
    %188 = vmatpush1.xpose.msra.mxu0 %v160
    %189 = vmatprep.subr.mxu0 0.0
    %190 = vmatpush1.xpose.msra.mxu0 %v161
    %191 = vmatprep.subr.mxu0 0.0
    %192 = vmatpush1.xpose.msra.mxu0 %v162
    %193 = vmatprep.subr.mxu0 0.0
    %194 = vmatpush1.xpose.msra.mxu0 %v163
    %195 = vmatprep.subr.mxu0 0.0
    %196 = vmatpush1.xpose.msra.mxu0 %v164
    %197 = vmatprep.subr.mxu0 0.0
    %198 = vmatpush1.xpose.msra.mxu0 0.0
    %199 = vmatprep.subr.mxu0 0.0
    %200 = vmatpush1.xpose.msra.mxu0 0.0
    %201 = vmatprep.subr.mxu0 0.0
    %202 = vmatpush1.xpose.msra.mxu0 0.0
    %203 = vmatprep.subr.mxu0 0.0
    %204 = vmatpush1.xpose.msra.mxu0 0.0
    %205 = vmatprep.subr.mxu0 0.0
    %206 = vmatpush1.xpose.msra.mxu0 0.0
    %207 = vmatprep.subr.mxu0 0.0
    %208 = vmatpush1.xpose.msra.mxu0 0.0
    %209 = vmatprep.subr.mxu0 0.0
    %210 = vmatpush1.xpose.msra.mxu0 0.0
    %211 = vmatprep.subr.mxu0 0.0
    %212 = vmatpush1.xpose.msra.mxu0 0.0
    %213 = vmatprep.subr.mxu0 0.0
    %214 = vmatpush1.xpose.msra.mxu0 0.0
    %215 = vmatprep.subr.mxu0 0.0
    %216 = vmatpush1.xpose.msra.mxu0 0.0
    %217 = vmatprep.subr.mxu0 0.0
    %218 = vmatpush1.xpose.msra.mxu0 0.0
    %219 = vmatprep.subr.mxu0 0.0
    %220 = vmatpush1.xpose.msra.mxu0 0.0
    %221 = vmatprep.subr.mxu0 0.0
    %222 = vmatpush1.xpose.msra.mxu0 0.0
    %223 = vmatprep.subr.mxu0 0.0
    %224 = vmatpush1.xpose.msra.mxu0 0.0
    %225 = vmatprep.subr.mxu0 0.0
    %226 = vmatpush1.xpose.msra.mxu0 0.0
    %227 = vmatprep.subr.mxu0 0.0
    %228 = vmatpush1.xpose.msra.mxu0 0.0
    %229 = vmatprep.mubr.f32.mxu0 0.0
    %230 = vmatmul.mubr.f32.gmra.mrb[0].mxu0 %v132
    %v231 = vpop.f32.mrb[0].mxu0
    %v232 = vadd.f32 0.0, %v231
    %v233 = vpop.f32.mrb[0].mxu0
    %234 = vmatprep.mubr.f32.mxu0 0.0
    %235 = vmatmul.mubr.f32.gmra.mrb[0].mxu0 %v133
    %v236 = vpop.f32.mrb[0].mxu0
    %v237 = vadd.f32 0.0, %v236
    %v238 = vpop.f32.mrb[0].mxu0
    %239 = vmatprep.mubr.f32.mxu0 0.0
    %240 = vmatmul.mubr.f32.gmra.mrb[0].mxu0 %v134
    %v241 = vpop.f32.mrb[0].mxu0
    %v242 = vadd.f32 0.0, %v241
    %v243 = vpop.f32.mrb[0].mxu0
    %244 = vmatprep.mubr.f32.mxu0 0.0
    %245 = vmatmul.mubr.f32.gmra.mrb[0].mxu0 %v135
    %v246 = vpop.f32.mrb[0].mxu0
    %v247 = vadd.f32 0.0, %v246
    %v248 = vpop.f32.mrb[0].mxu0
    %249 = vmatprep.mubr.f32.mxu0 0.0
    %250 = vmatmul.mubr.f32.gmra.mrb[0].mxu0 %v136
    %v251 = vpop.f32.mrb[0].mxu0
    %v252 = vadd.f32 0.0, %v251
    %v253 = vpop.f32.mrb[0].mxu0
    %254 = vmatprep.mubr.f32.mxu0 0.0
    %255 = vmatmul.mubr.f32.gmra.mrb[0].mxu0 %v137
    %v256 = vpop.f32.mrb[0].mxu0
    %v257 = vadd.f32 0.0, %v256
    %v258 = vpop.f32.mrb[0].mxu0
    %259 = vmatprep.mubr.f32.mxu0 0.0
    %260 = vmatmul.mubr.f32.gmra.mrb[0].mxu0 %v138
    %v261 = vpop.f32.mrb[0].mxu0
    %v262 = vadd.f32 0.0, %v261
    %v263 = vpop.f32.mrb[0].mxu0
    %264 = vmatprep.mubr.f32.mxu0 0.0
    %265 = vmatmul.mubr.f32.gmra.mrb[0].mxu0 %v139
    %v266 = vpop.f32.mrb[0].mxu0
    %v267 = vadd.f32 0.0, %v266
    %v268 = vpop.f32.mrb[0].mxu0
    %269 = vmatprep.mubr.f32.mxu0 0.0
    %270 = vmatmul.mubr.f32.gmra.mrb[0].mxu0 %v140
    %v271 = vpop.f32.mrb[0].mxu0
    %v272 = vadd.f32 0.0, %v271
    %v273 = vpop.f32.mrb[0].mxu0
    %274 = vmatprep.mubr.f32.mxu0 0.0
    %275 = vmatmul.mubr.f32.gmra.mrb[0].mxu0 %v141
    %v276 = vpop.f32.mrb[0].mxu0
    %v277 = vadd.f32 0.0, %v276
    %v278 = vpop.f32.mrb[0].mxu0
    %279 = vmatprep.mubr.f32.mxu0 0.0
    %280 = vmatmul.mubr.f32.gmra.mrb[0].mxu0 %v142
    %v281 = vpop.f32.mrb[0].mxu0
    %v282 = vadd.f32 0.0, %v281
    %v283 = vpop.f32.mrb[0].mxu0
    %284 = vmatprep.mubr.f32.mxu0 0.0
    %285 = vmatmul.mubr.f32.gmra.mrb[0].mxu0 %v143
    %v286 = vpop.f32.mrb[0].mxu0
    %v287 = vadd.f32 0.0, %v286
    %v288 = vpop.f32.mrb[0].mxu0
    %289 = vmatprep.mubr.f32.mxu0 0.0
    %290 = vmatmul.mubr.f32.gmra.mrb[0].mxu0 %v144
    %v291 = vpop.f32.mrb[0].mxu0
    %v292 = vadd.f32 0.0, %v291
    %v293 = vpop.f32.mrb[0].mxu0
    %294 = vmatprep.mubr.f32.mxu0 0.0
    %295 = vmatmul.mubr.f32.gmra.mrb[0].mxu0 %v145
    %v296 = vpop.f32.mrb[0].mxu0
    %v297 = vadd.f32 0.0, %v296
    %v298 = vpop.f32.mrb[0].mxu0
    %299 = vmatprep.mubr.f32.mxu0 0.0
    %300 = vmatmul.mubr.f32.gmra.mrb[0].mxu0 %v146
    %v301 = vpop.f32.mrb[0].mxu0
    %v302 = vadd.f32 0.0, %v301
    %v303 = vpop.f32.mrb[0].mxu0
    %304 = vmatprep.mubr.f32.mxu0 0.0
    %305 = vmatmul.mubr.f32.gmra.mrb[0].mxu0 %v147
    %v306 = vpop.f32.mrb[0].mxu0
    %v307 = vadd.f32 0.0, %v306
    %v308 = vpop.f32.mrb[0].mxu0
    %309 = vdwg.mxu0
    %v310 = vld [vmem:[%s6] sm:$0xff]
    %v311 = vld [vmem:[%s6 + $0x8] sm:$0xff]
    %v312 = vld [vmem:[%s6 + $0x10] sm:$0xff]
    %v313 = vld [vmem:[%s6 + $0x18] sm:$0xff]
    %v314 = vld [vmem:[%s6 + $0x20] sm:$0xff]
    %v315 = vld [vmem:[%s6 + $0x28] sm:$0xff]
    %v316 = vld [vmem:[%s6 + $0x30] sm:$0xff]
    %v317 = vld [vmem:[%s6 + $0x38] sm:$0xff]
    %v318 = vld [vmem:[%s6 + $0x40] sm:$0xff]
    %v319 = vld [vmem:[%s6 + $0x48] sm:$0xff]
    %v320 = vld [vmem:[%s6 + $0x50] sm:$0xff]
    %v321 = vld [vmem:[%s6 + $0x58] sm:$0xff]
    %v322 = vld [vmem:[%s6 + $0x60] sm:$0xff]
    %v323 = vld [vmem:[%s6 + $0x68] sm:$0xff]
    %v324 = vld [vmem:[%s6 + $0x70] sm:$0xff]
    %v325 = vld [vmem:[%s6 + $0x78] sm:$0xff]
    %327 = vset.pattern.permute.xlu0 0
    %328 = vperm.xlu0 %327, %v310
    %v329 = vpop.permute.xlu0 %328
    %332 = vset.pattern.permute.xlu0 0
    %333 = vperm.xlu0 %332, %v311
    %v334 = vpop.permute.xlu0 %333
    %337 = vset.pattern.permute.xlu0 0
    %338 = vperm.xlu0 %337, %v312
    %v339 = vpop.permute.xlu0 %338
    %342 = vset.pattern.permute.xlu0 0
    %343 = vperm.xlu0 %342, %v313
    %v344 = vpop.permute.xlu0 %343
    %347 = vset.pattern.permute.xlu0 0
    %348 = vperm.xlu0 %347, %v314
    %v349 = vpop.permute.xlu0 %348
    %352 = vset.pattern.permute.xlu0 0
    %353 = vperm.xlu0 %352, %v315
    %v354 = vpop.permute.xlu0 %353
    %357 = vset.pattern.permute.xlu0 0
    %358 = vperm.xlu0 %357, %v316
    %v359 = vpop.permute.xlu0 %358
    %362 = vset.pattern.permute.xlu0 0
    %363 = vperm.xlu0 %362, %v317
    %v364 = vpop.permute.xlu0 %363
    %367 = vset.pattern.permute.xlu0 0
    %368 = vperm.xlu0 %367, %v318
    %v369 = vpop.permute.xlu0 %368
    %372 = vset.pattern.permute.xlu0 0
    %373 = vperm.xlu0 %372, %v319
    %v374 = vpop.permute.xlu0 %373
    %377 = vset.pattern.permute.xlu0 0
    %378 = vperm.xlu0 %377, %v320
    %v379 = vpop.permute.xlu0 %378
    %382 = vset.pattern.permute.xlu0 0
    %383 = vperm.xlu0 %382, %v321
    %v384 = vpop.permute.xlu0 %383
    %387 = vset.pattern.permute.xlu0 0
    %388 = vperm.xlu0 %387, %v322
    %v389 = vpop.permute.xlu0 %388
    %392 = vset.pattern.permute.xlu0 0
    %393 = vperm.xlu0 %392, %v323
    %v394 = vpop.permute.xlu0 %393
    %397 = vset.pattern.permute.xlu0 0
    %398 = vperm.xlu0 %397, %v324
    %v399 = vpop.permute.xlu0 %398
    %402 = vset.pattern.permute.xlu0 0
    %403 = vperm.xlu0 %402, %v325
    %v404 = vpop.permute.xlu0 %403
    %v406 = vmul.f32 %v232, %v329
    %v407 = vmul.f32 %v237, %v334
    %v408 = vmul.f32 %v242, %v339
    %v409 = vmul.f32 %v247, %v344
    %v410 = vmul.f32 %v252, %v349
    %v411 = vmul.f32 %v257, %v354
    %v412 = vmul.f32 %v262, %v359
    %v413 = vmul.f32 %v267, %v364
    %v414 = vmul.f32 %v272, %v369
    %v415 = vmul.f32 %v277, %v374
    %v416 = vmul.f32 %v282, %v379
    %v417 = vmul.f32 %v287, %v384
    %v418 = vmul.f32 %v292, %v389
    %v419 = vmul.f32 %v297, %v394
    %v420 = vmul.f32 %v302, %v399
    %v421 = vmul.f32 %v307, %v404
    %v422 = vld [vmem:[%s2] sm:$0x1]
    %v424 = vlaneseq
    %v425 = vshrl.u32 %v424, 7
    %v426 = vsub.s32 0, %v425
    %v427 = vrot.slane %v422, %v426
    %v429 = vmul.f32 %v406, %v427
    %v430 = vmul.f32 %v407, %v427
    %v431 = vmul.f32 %v408, %v427
    %v432 = vmul.f32 %v409, %v427
    %v433 = vmul.f32 %v410, %v427
    %v434 = vmul.f32 %v411, %v427
    %v435 = vmul.f32 %v412, %v427
    %v436 = vmul.f32 %v413, %v427
    %v437 = vmul.f32 %v414, %v427
    %v438 = vmul.f32 %v415, %v427
    %v439 = vmul.f32 %v416, %v427
    %v440 = vmul.f32 %v417, %v427
    %v441 = vmul.f32 %v418, %v427
    %v442 = vmul.f32 %v419, %v427
    %v443 = vmul.f32 %v420, %v427
    %v444 = vmul.f32 %v421, %v427
    %v445 = vld [vmem:[%s5] sm:$0xff]
    %v446 = vld [vmem:[%s5 + $0x8] sm:$0xff]
    %v447 = vld [vmem:[%s5 + $0x10] sm:$0xff]
    %v448 = vld [vmem:[%s5 + $0x18] sm:$0xff]
    %v449 = vld [vmem:[%s5 + $0x20] sm:$0xff]
    %v450 = vld [vmem:[%s5 + $0x28] sm:$0xff]
    %v451 = vld [vmem:[%s5 + $0x30] sm:$0xff]
    %v452 = vld [vmem:[%s5 + $0x38] sm:$0xff]
    %v453 = vld [vmem:[%s5 + $0x40] sm:$0xff]
    %v454 = vld [vmem:[%s5 + $0x48] sm:$0xff]
    %v455 = vld [vmem:[%s5 + $0x50] sm:$0xff]
    %v456 = vld [vmem:[%s5 + $0x58] sm:$0xff]
    %v457 = vld [vmem:[%s5 + $0x60] sm:$0xff]
    %v458 = vld [vmem:[%s5 + $0x68] sm:$0xff]
    %v459 = vld [vmem:[%s5 + $0x70] sm:$0xff]
    %v460 = vld [vmem:[%s5 + $0x78] sm:$0xff]
    %v461 = vld [vmem:[%s1] sm:$0x1]
    %462 = vset.pattern.permute.xlu0 0
    %463 = vperm.xlu0 %462, %v445
    %v464 = vpop.permute.xlu0 %463
    %465 = vset.pattern.permute.xlu0 0
    %466 = vperm.xlu0 %465, %v446
    %v467 = vpop.permute.xlu0 %466
    %468 = vset.pattern.permute.xlu0 0
    %469 = vperm.xlu0 %468, %v447
    %v470 = vpop.permute.xlu0 %469
    %471 = vset.pattern.permute.xlu0 0
    %472 = vperm.xlu0 %471, %v448
    %v473 = vpop.permute.xlu0 %472
    %474 = vset.pattern.permute.xlu0 0
    %475 = vperm.xlu0 %474, %v449
    %v476 = vpop.permute.xlu0 %475
    %477 = vset.pattern.permute.xlu0 0
    %478 = vperm.xlu0 %477, %v450
    %v479 = vpop.permute.xlu0 %478
    %480 = vset.pattern.permute.xlu0 0
    %481 = vperm.xlu0 %480, %v451
    %v482 = vpop.permute.xlu0 %481
    %483 = vset.pattern.permute.xlu0 0
    %484 = vperm.xlu0 %483, %v452
    %v485 = vpop.permute.xlu0 %484
    %486 = vset.pattern.permute.xlu0 0
    %487 = vperm.xlu0 %486, %v453
    %v488 = vpop.permute.xlu0 %487
    %489 = vset.pattern.permute.xlu0 0
    %490 = vperm.xlu0 %489, %v454
    %v491 = vpop.permute.xlu0 %490
    %492 = vset.pattern.permute.xlu0 0
    %493 = vperm.xlu0 %492, %v455
    %v494 = vpop.permute.xlu0 %493
    %495 = vset.pattern.permute.xlu0 0
    %496 = vperm.xlu0 %495, %v456
    %v497 = vpop.permute.xlu0 %496
    %498 = vset.pattern.permute.xlu0 0
    %499 = vperm.xlu0 %498, %v457
    %v500 = vpop.permute.xlu0 %499
    %501 = vset.pattern.permute.xlu0 0
    %502 = vperm.xlu0 %501, %v458
    %v503 = vpop.permute.xlu0 %502
    %504 = vset.pattern.permute.xlu0 0
    %505 = vperm.xlu0 %504, %v459
    %v506 = vpop.permute.xlu0 %505
    %507 = vset.pattern.permute.xlu0 0
    %508 = vperm.xlu0 %507, %v460
    %v509 = vpop.permute.xlu0 %508
    %v510 = vlaneseq
    %v511 = vshrl.u32 %v510, 7
    %v512 = vsub.s32 0, %v511
    %v513 = vrot.slane %v461, %v512
    %vm514 = vcmp.eq.s32.totalorder %v464, %v513
    %vm515 = vcmp.eq.s32.totalorder %v467, %v513
    %vm516 = vcmp.eq.s32.totalorder %v470, %v513
    %vm517 = vcmp.eq.s32.totalorder %v473, %v513
    %vm518 = vcmp.eq.s32.totalorder %v476, %v513
    %vm519 = vcmp.eq.s32.totalorder %v479, %v513
    %vm520 = vcmp.eq.s32.totalorder %v482, %v513
    %vm521 = vcmp.eq.s32.totalorder %v485, %v513
    %vm522 = vcmp.eq.s32.totalorder %v488, %v513
    %vm523 = vcmp.eq.s32.totalorder %v491, %v513
    %vm524 = vcmp.eq.s32.totalorder %v494, %v513
    %vm525 = vcmp.eq.s32.totalorder %v497, %v513
    %vm526 = vcmp.eq.s32.totalorder %v500, %v513
    %vm527 = vcmp.eq.s32.totalorder %v503, %v513
    %vm528 = vcmp.eq.s32.totalorder %v506, %v513
    %vm529 = vcmp.eq.s32.totalorder %v509, %v513
    %vm530 = vmxor %vm116, 1
    %vm531 = vmxor %vm117, 1
    %vm532 = vmxor %vm118, 1
    %vm533 = vmxor %vm119, 1
    %vm534 = vmxor %vm120, 1
    %vm535 = vmxor %vm121, 1
    %vm536 = vmxor %vm122, 1
    %vm537 = vmxor %vm123, 1
    %vm538 = vmxor %vm124, 1
    %vm539 = vmxor %vm125, 1
    %vm540 = vmxor %vm126, 1
    %vm541 = vmxor %vm127, 1
    %vm542 = vmxor %vm128, 1
    %vm543 = vmxor %vm129, 1
    %vm544 = vmxor %vm130, 1
    %vm545 = vmxor %vm131, 1
    %vm546 = vmand %vm514, %vm530
    %vm547 = vmand %vm515, %vm531
    %vm548 = vmand %vm516, %vm532
    %vm549 = vmand %vm517, %vm533
    %vm550 = vmand %vm518, %vm534
    %vm551 = vmand %vm519, %vm535
    %vm552 = vmand %vm520, %vm536
    %vm553 = vmand %vm521, %vm537
    %vm554 = vmand %vm522, %vm538
    %vm555 = vmand %vm523, %vm539
    %vm556 = vmand %vm524, %vm540
    %vm557 = vmand %vm525, %vm541
    %vm558 = vmand %vm526, %vm542
    %vm559 = vmand %vm527, %vm543
    %vm560 = vmand %vm528, %vm544
    %vm561 = vmand %vm529, %vm545
    %vm562 = vmand %vm546, %vm100
    %vm563 = vmand %vm547, %vm101
    %vm564 = vmand %vm548, %vm102
    %vm565 = vmand %vm549, %vm103
    %vm566 = vmand %vm550, %vm104
    %vm567 = vmand %vm551, %vm105
    %vm568 = vmand %vm552, %vm106
    %vm569 = vmand %vm553, %vm107
    %vm570 = vmand %vm554, %vm108
    %vm571 = vmand %vm555, %vm109
    %vm572 = vmand %vm556, %vm110
    %vm573 = vmand %vm557, %vm111
    %vm574 = vmand %vm558, %vm112
    %vm575 = vmand %vm559, %vm113
    %vm576 = vmand %vm560, %vm114
    %vm577 = vmand %vm561, %vm115
    %vm578 = vmxor %vm514, 1
    %vm579 = vmxor %vm515, 1
    %vm580 = vmxor %vm516, 1
    %vm581 = vmxor %vm517, 1
    %vm582 = vmxor %vm518, 1
    %vm583 = vmxor %vm519, 1
    %vm584 = vmxor %vm520, 1
    %vm585 = vmxor %vm521, 1
    %vm586 = vmxor %vm522, 1
    %vm587 = vmxor %vm523, 1
    %vm588 = vmxor %vm524, 1
    %vm589 = vmxor %vm525, 1
    %vm590 = vmxor %vm526, 1
    %vm591 = vmxor %vm527, 1
    %vm592 = vmxor %vm528, 1
    %vm593 = vmxor %vm529, 1
    %vm594 = vmand %vm578, %vm100
    %vm595 = vmand %vm579, %vm101
    %vm596 = vmand %vm580, %vm102
    %vm597 = vmand %vm581, %vm103
    %vm598 = vmand %vm582, %vm104
    %vm599 = vmand %vm583, %vm105
    %vm600 = vmand %vm584, %vm106
    %vm601 = vmand %vm585, %vm107
    %vm602 = vmand %vm586, %vm108
    %vm603 = vmand %vm587, %vm109
    %vm604 = vmand %vm588, %vm110
    %vm605 = vmand %vm589, %vm111
    %vm606 = vmand %vm590, %vm112
    %vm607 = vmand %vm591, %vm113
    %vm608 = vmand %vm592, %vm114
    %vm609 = vmand %vm593, %vm115
    %v610 = vsel %vm594, %v429, -3e+38
    %v611 = vsel %vm595, %v430, -3e+38
    %v612 = vsel %vm596, %v431, -3e+38
    %v613 = vsel %vm597, %v432, -3e+38
    %v614 = vsel %vm598, %v433, -3e+38
    %v615 = vsel %vm599, %v434, -3e+38
    %v616 = vsel %vm600, %v435, -3e+38
    %v617 = vsel %vm601, %v436, -3e+38
    %v618 = vsel %vm602, %v437, -3e+38
    %v619 = vsel %vm603, %v438, -3e+38
    %v620 = vsel %vm604, %v439, -3e+38
    %v621 = vsel %vm605, %v440, -3e+38
    %v622 = vsel %vm606, %v441, -3e+38
    %v623 = vsel %vm607, %v442, -3e+38
    %v624 = vsel %vm608, %v443, -3e+38
    %v625 = vsel %vm609, %v444, -3e+38
    %v626 = vmax.f32 %v610, %v614
    %v627 = vmax.f32 %v611, %v615
    %v628 = vmax.f32 %v612, %v616
    %v629 = vmax.f32 %v613, %v617
    %v630 = vmax.f32 %v626, %v618
    %v631 = vmax.f32 %v627, %v619
    %v632 = vmax.f32 %v628, %v620
    %v633 = vmax.f32 %v629, %v621
    %v634 = vmax.f32 %v630, %v622
    %v635 = vmax.f32 %v631, %v623
    %v636 = vmax.f32 %v632, %v624
    %v637 = vmax.f32 %v633, %v625
    %v638 = vmax.f32 %v634, %v635
    %v639 = vmax.f32 %v636, %v637
    %v640 = vmax.f32 %v638, %v639
    %v641 = vrot.slane %v640, 4
    %v642 = vmax.f32 %v640, %v641
    %v643 = vrot.slane %v642, 2
    %v644 = vmax.f32 %v642, %v643
    %v645 = vrot.slane %v644, 1
    %v646 = vmax.f32 %v644, %v645
    %v647 = vsel %vm562, %v429, 3e+38
    %v648 = vsel %vm563, %v430, 3e+38
    %v649 = vsel %vm564, %v431, 3e+38
    %v650 = vsel %vm565, %v432, 3e+38
    %v651 = vsel %vm566, %v433, 3e+38
    %v652 = vsel %vm567, %v434, 3e+38
    %v653 = vsel %vm568, %v435, 3e+38
    %v654 = vsel %vm569, %v436, 3e+38
    %v655 = vsel %vm570, %v437, 3e+38
    %v656 = vsel %vm571, %v438, 3e+38
    %v657 = vsel %vm572, %v439, 3e+38
    %v658 = vsel %vm573, %v440, 3e+38
    %v659 = vsel %vm574, %v441, 3e+38
    %v660 = vsel %vm575, %v442, 3e+38
    %v661 = vsel %vm576, %v443, 3e+38
    %v662 = vsel %vm577, %v444, 3e+38
    %v663 = vmin.f32 %v647, %v651
    %v664 = vmin.f32 %v648, %v652
    %v665 = vmin.f32 %v649, %v653
    %v666 = vmin.f32 %v650, %v654
    %v667 = vmin.f32 %v663, %v655
    %v668 = vmin.f32 %v664, %v656
    %v669 = vmin.f32 %v665, %v657
    %v670 = vmin.f32 %v666, %v658
    %v671 = vmin.f32 %v667, %v659
    %v672 = vmin.f32 %v668, %v660
    %v673 = vmin.f32 %v669, %v661
    %v674 = vmin.f32 %v670, %v662
    %v675 = vmin.f32 %v671, %v672
    %v676 = vmin.f32 %v673, %v674
    %v677 = vmin.f32 %v675, %v676
    %v678 = vrot.slane %v677, 4
    %v679 = vmin.f32 %v677, %v678
    %v680 = vrot.slane %v679, 2
    %v681 = vmin.f32 %v679, %v680
    %v682 = vrot.slane %v681, 1
    %v683 = vmin.f32 %v681, %v682
    %v684 = vsub.f32 %v429, 0.1
    %v685 = vsub.f32 %v430, 0.1
    %v686 = vsub.f32 %v431, 0.1
    %v687 = vsub.f32 %v432, 0.1
    %v688 = vsub.f32 %v433, 0.1
    %v689 = vsub.f32 %v434, 0.1
    %v690 = vsub.f32 %v435, 0.1
    %v691 = vsub.f32 %v436, 0.1
    %v692 = vsub.f32 %v437, 0.1
    %v693 = vsub.f32 %v438, 0.1
    %v694 = vsub.f32 %v439, 0.1
    %v695 = vsub.f32 %v440, 0.1
    %v696 = vsub.f32 %v441, 0.1
    %v697 = vsub.f32 %v442, 0.1
    %v698 = vsub.f32 %v443, 0.1
    %v699 = vsub.f32 %v444, 0.1
    %vm700 = vcmp.lt.f32.partialorder %v684, %v646
    %vm701 = vcmp.lt.f32.partialorder %v685, %v646
    %vm702 = vcmp.lt.f32.partialorder %v686, %v646
    %vm703 = vcmp.lt.f32.partialorder %v687, %v646
    %vm704 = vcmp.lt.f32.partialorder %v688, %v646
    %vm705 = vcmp.lt.f32.partialorder %v689, %v646
    %vm706 = vcmp.lt.f32.partialorder %v690, %v646
    %vm707 = vcmp.lt.f32.partialorder %v691, %v646
    %vm708 = vcmp.lt.f32.partialorder %v692, %v646
    %vm709 = vcmp.lt.f32.partialorder %v693, %v646
    %vm710 = vcmp.lt.f32.partialorder %v694, %v646
    %vm711 = vcmp.lt.f32.partialorder %v695, %v646
    %vm712 = vcmp.lt.f32.partialorder %v696, %v646
    %vm713 = vcmp.lt.f32.partialorder %v697, %v646
    %vm714 = vcmp.lt.f32.partialorder %v698, %v646
    %vm715 = vcmp.lt.f32.partialorder %v699, %v646
    %vm716 = vmand %vm562, %vm700
    %vm717 = vmand %vm563, %vm701
    %vm718 = vmand %vm564, %vm702
    %vm719 = vmand %vm565, %vm703
    %vm720 = vmand %vm566, %vm704
    %vm721 = vmand %vm567, %vm705
    %vm722 = vmand %vm568, %vm706
    %vm723 = vmand %vm569, %vm707
    %vm724 = vmand %vm570, %vm708
    %vm725 = vmand %vm571, %vm709
    %vm726 = vmand %vm572, %vm710
    %vm727 = vmand %vm573, %vm711
    %vm728 = vmand %vm574, %vm712
    %vm729 = vmand %vm575, %vm713
    %vm730 = vmand %vm576, %vm714
    %vm731 = vmand %vm577, %vm715
    %v732 = vadd.f32 %v429, 0.1
    %v733 = vadd.f32 %v430, 0.1
    %v734 = vadd.f32 %v431, 0.1
    %v735 = vadd.f32 %v432, 0.1
    %v736 = vadd.f32 %v433, 0.1
    %v737 = vadd.f32 %v434, 0.1
    %v738 = vadd.f32 %v435, 0.1
    %v739 = vadd.f32 %v436, 0.1
    %v740 = vadd.f32 %v437, 0.1
    %v741 = vadd.f32 %v438, 0.1
    %v742 = vadd.f32 %v439, 0.1
    %v743 = vadd.f32 %v440, 0.1
    %v744 = vadd.f32 %v441, 0.1
    %v745 = vadd.f32 %v442, 0.1
    %v746 = vadd.f32 %v443, 0.1
    %v747 = vadd.f32 %v444, 0.1
    %vm748 = vcmp.gt.f32.partialorder %v732, %v683
    %vm749 = vcmp.gt.f32.partialorder %v733, %v683
    %vm750 = vcmp.gt.f32.partialorder %v734, %v683
    %vm751 = vcmp.gt.f32.partialorder %v735, %v683
    %vm752 = vcmp.gt.f32.partialorder %v736, %v683
    %vm753 = vcmp.gt.f32.partialorder %v737, %v683
    %vm754 = vcmp.gt.f32.partialorder %v738, %v683
    %vm755 = vcmp.gt.f32.partialorder %v739, %v683
    %vm756 = vcmp.gt.f32.partialorder %v740, %v683
    %vm757 = vcmp.gt.f32.partialorder %v741, %v683
    %vm758 = vcmp.gt.f32.partialorder %v742, %v683
    %vm759 = vcmp.gt.f32.partialorder %v743, %v683
    %vm760 = vcmp.gt.f32.partialorder %v744, %v683
    %vm761 = vcmp.gt.f32.partialorder %v745, %v683
    %vm762 = vcmp.gt.f32.partialorder %v746, %v683
    %vm763 = vcmp.gt.f32.partialorder %v747, %v683
    %vm764 = vmand %vm594, %vm748
    %vm765 = vmand %vm595, %vm749
    %vm766 = vmand %vm596, %vm750
    %vm767 = vmand %vm597, %vm751
    %vm768 = vmand %vm598, %vm752
    %vm769 = vmand %vm599, %vm753
    %vm770 = vmand %vm600, %vm754
    %vm771 = vmand %vm601, %vm755
    %vm772 = vmand %vm602, %vm756
    %vm773 = vmand %vm603, %vm757
    %vm774 = vmand %vm604, %vm758
    %vm775 = vmand %vm605, %vm759
    %vm776 = vmand %vm606, %vm760
    %vm777 = vmand %vm607, %vm761
    %vm778 = vmand %vm608, %vm762
    %vm779 = vmand %vm609, %vm763
    %v780 = vsel %vm716, %v429, 3e+38
    %v781 = vsel %vm717, %v430, 3e+38
    %v782 = vsel %vm718, %v431, 3e+38
    %v783 = vsel %vm719, %v432, 3e+38
    %v784 = vsel %vm720, %v433, 3e+38
    %v785 = vsel %vm721, %v434, 3e+38
    %v786 = vsel %vm722, %v435, 3e+38
    %v787 = vsel %vm723, %v436, 3e+38
    %v788 = vsel %vm724, %v437, 3e+38
    %v789 = vsel %vm725, %v438, 3e+38
    %v790 = vsel %vm726, %v439, 3e+38
    %v791 = vsel %vm727, %v440, 3e+38
    %v792 = vsel %vm728, %v441, 3e+38
    %v793 = vsel %vm729, %v442, 3e+38
    %v794 = vsel %vm730, %v443, 3e+38
    %v795 = vsel %vm731, %v444, 3e+38
    %796 = vst [vmem:[#allocation2] sm:$0xff] %v780
    %797 = vst [vmem:[#allocation2 + $0x8] sm:$0xff] %v781
    %798 = vst [vmem:[#allocation2 + $0x10] sm:$0xff] %v782
    %799 = vst [vmem:[#allocation2 + $0x18] sm:$0xff] %v783
    %800 = vst [vmem:[#allocation2 + $0x20] sm:$0xff] %v784
    %801 = vst [vmem:[#allocation2 + $0x28] sm:$0xff] %v785
    %802 = vst [vmem:[#allocation2 + $0x30] sm:$0xff] %v786
    %803 = vst [vmem:[#allocation2 + $0x38] sm:$0xff] %v787
    %804 = vst [vmem:[#allocation2 + $0x40] sm:$0xff] %v788
    %805 = vst [vmem:[#allocation2 + $0x48] sm:$0xff] %v789
    %806 = vst [vmem:[#allocation2 + $0x50] sm:$0xff] %v790
    %807 = vst [vmem:[#allocation2 + $0x58] sm:$0xff] %v791
    %808 = vst [vmem:[#allocation2 + $0x60] sm:$0xff] %v792
    %809 = vst [vmem:[#allocation2 + $0x68] sm:$0xff] %v793
    %810 = vst [vmem:[#allocation2 + $0x70] sm:$0xff] %v794
    %811 = vst [vmem:[#allocation2 + $0x78] sm:$0xff] %v795
    %v812 = vsel %vm764, %v429, -3e+38
    %v813 = vsel %vm765, %v430, -3e+38
    %v814 = vsel %vm766, %v431, -3e+38
    %v815 = vsel %vm767, %v432, -3e+38
    %v816 = vsel %vm768, %v433, -3e+38
    %v817 = vsel %vm769, %v434, -3e+38
    %v818 = vsel %vm770, %v435, -3e+38
    %v819 = vsel %vm771, %v436, -3e+38
    %v820 = vsel %vm772, %v437, -3e+38
    %v821 = vsel %vm773, %v438, -3e+38
    %v822 = vsel %vm774, %v439, -3e+38
    %v823 = vsel %vm775, %v440, -3e+38
    %v824 = vsel %vm776, %v441, -3e+38
    %v825 = vsel %vm777, %v442, -3e+38
    %v826 = vsel %vm778, %v443, -3e+38
    %v827 = vsel %vm779, %v444, -3e+38
    %828 = vst [vmem:[#allocation3] sm:$0xff] %v812
    %829 = vst [vmem:[#allocation3 + $0x8] sm:$0xff] %v813
    %830 = vst [vmem:[#allocation3 + $0x10] sm:$0xff] %v814
    %831 = vst [vmem:[#allocation3 + $0x18] sm:$0xff] %v815
    %832 = vst [vmem:[#allocation3 + $0x20] sm:$0xff] %v816
    %833 = vst [vmem:[#allocation3 + $0x28] sm:$0xff] %v817
    %834 = vst [vmem:[#allocation3 + $0x30] sm:$0xff] %v818
    %835 = vst [vmem:[#allocation3 + $0x38] sm:$0xff] %v819
    %836 = vst [vmem:[#allocation3 + $0x40] sm:$0xff] %v820
    %837 = vst [vmem:[#allocation3 + $0x48] sm:$0xff] %v821
    %838 = vst [vmem:[#allocation3 + $0x50] sm:$0xff] %v822
    %839 = vst [vmem:[#allocation3 + $0x58] sm:$0xff] %v823
    %840 = vst [vmem:[#allocation3 + $0x60] sm:$0xff] %v824
    %841 = vst [vmem:[#allocation3 + $0x68] sm:$0xff] %v825
    %842 = vst [vmem:[#allocation3 + $0x70] sm:$0xff] %v826
    %843 = vst [vmem:[#allocation3 + $0x78] sm:$0xff] %v827
    %v844 = vld [vmem:[#allocation3] sm:$0xff]
    %v845 = vld [vmem:[#allocation3 + $0x8] sm:$0xff]
    %v846 = vld [vmem:[#allocation3 + $0x10] sm:$0xff]
    %v847 = vld [vmem:[#allocation3 + $0x18] sm:$0xff]
    %v848 = vld [vmem:[#allocation3 + $0x20] sm:$0xff]
    %v849 = vld [vmem:[#allocation3 + $0x28] sm:$0xff]
    %v850 = vld [vmem:[#allocation3 + $0x30] sm:$0xff]
    %v851 = vld [vmem:[#allocation3 + $0x38] sm:$0xff]
    %v852 = vld [vmem:[#allocation3 + $0x40] sm:$0xff]
    %v853 = vld [vmem:[#allocation3 + $0x48] sm:$0xff]
    %v854 = vld [vmem:[#allocation3 + $0x50] sm:$0xff]
    %v855 = vld [vmem:[#allocation3 + $0x58] sm:$0xff]
    %v856 = vld [vmem:[#allocation3 + $0x60] sm:$0xff]
    %v857 = vld [vmem:[#allocation3 + $0x68] sm:$0xff]
    %v858 = vld [vmem:[#allocation3 + $0x70] sm:$0xff]
    %v859 = vld [vmem:[#allocation3 + $0x78] sm:$0xff]
    %v860 = vld [vmem:[#allocation2] sm:$0x1]
    %v861 = vsub.f32 0.05, %v860
    %v862 = vlaneseq
    %v863 = vshrl.u32 %v862, 7
    %v864 = vsub.s32 0, %v863
    %v865 = vrot.slane %v861, %v864
    %v866 = vadd.f32 %v844, %v865
    %v867 = vadd.f32 %v845, %v865
    %v868 = vadd.f32 %v846, %v865
    %v869 = vadd.f32 %v847, %v865
    %v870 = vadd.f32 %v848, %v865
    %v871 = vadd.f32 %v849, %v865
    %v872 = vadd.f32 %v850, %v865
    %v873 = vadd.f32 %v851, %v865
    %v874 = vadd.f32 %v852, %v865
    %v875 = vadd.f32 %v853, %v865
    %v876 = vadd.f32 %v854, %v865
    %v877 = vadd.f32 %v855, %v865
    %v878 = vadd.f32 %v856, %v865
    %v879 = vadd.f32 %v857, %v865
    %v880 = vadd.f32 %v858, %v865
    %v881 = vadd.f32 %v859, %v865
    %v882 = vmax.f32 %v866, 0.0
    %v883 = vmax.f32 %v867, 0.0
    %v884 = vmax.f32 %v868, 0.0
    %v885 = vmax.f32 %v869, 0.0
    %v886 = vmax.f32 %v870, 0.0
    %v887 = vmax.f32 %v871, 0.0
    %v888 = vmax.f32 %v872, 0.0
    %v889 = vmax.f32 %v873, 0.0
    %v890 = vmax.f32 %v874, 0.0
    %v891 = vmax.f32 %v875, 0.0
    %v892 = vmax.f32 %v876, 0.0
    %v893 = vmax.f32 %v877, 0.0
    %v894 = vmax.f32 %v878, 0.0
    %v895 = vmax.f32 %v879, 0.0
    %v896 = vmax.f32 %v880, 0.0
    %v897 = vmax.f32 %v881, 0.0
    %v898 = vadd.f32 %v882, %v883
    %v899 = vadd.f32 %v898, %v884
    %v900 = vadd.f32 %v899, %v885
    %v901 = vadd.f32 %v900, %v886
    %v902 = vadd.f32 %v901, %v887
    %v903 = vadd.f32 %v902, %v888
    %v904 = vadd.f32 %v903, %v889
    %v905 = vadd.f32 %v904, %v890
    %v906 = vadd.f32 %v905, %v891
    %v907 = vadd.f32 %v906, %v892
    %v908 = vadd.f32 %v907, %v893
    %v909 = vadd.f32 %v908, %v894
    %v910 = vadd.f32 %v909, %v895
    %v911 = vadd.f32 %v910, %v896
    %v912 = vadd.f32 %v911, %v897
    %v913 = vadd.f32 %v912, 0.0
    %vm914 = vcmp.gt.f32.partialorder %v882, 0.0
    %vm915 = vcmp.gt.f32.partialorder %v883, 0.0
    %vm916 = vcmp.gt.f32.partialorder %v884, 0.0
    %vm917 = vcmp.gt.f32.partialorder %v885, 0.0
    %vm918 = vcmp.gt.f32.partialorder %v886, 0.0
    %vm919 = vcmp.gt.f32.partialorder %v887, 0.0
    %vm920 = vcmp.gt.f32.partialorder %v888, 0.0
    %vm921 = vcmp.gt.f32.partialorder %v889, 0.0
    %vm922 = vcmp.gt.f32.partialorder %v890, 0.0
    %vm923 = vcmp.gt.f32.partialorder %v891, 0.0
    %vm924 = vcmp.gt.f32.partialorder %v892, 0.0
    %vm925 = vcmp.gt.f32.partialorder %v893, 0.0
    %vm926 = vcmp.gt.f32.partialorder %v894, 0.0
    %vm927 = vcmp.gt.f32.partialorder %v895, 0.0
    %vm928 = vcmp.gt.f32.partialorder %v896, 0.0
    %vm929 = vcmp.gt.f32.partialorder %v897, 0.0
    %v930 = vsel %vm914, 1.0, 0.0
    %v931 = vsel %vm915, 1.0, 0.0
    %v932 = vsel %vm916, 1.0, 0.0
    %v933 = vsel %vm917, 1.0, 0.0
    %v934 = vsel %vm918, 1.0, 0.0
    %v935 = vsel %vm919, 1.0, 0.0
    %v936 = vsel %vm920, 1.0, 0.0
    %v937 = vsel %vm921, 1.0, 0.0
    %v938 = vsel %vm922, 1.0, 0.0
    %v939 = vsel %vm923, 1.0, 0.0
    %v940 = vsel %vm924, 1.0, 0.0
    %v941 = vsel %vm925, 1.0, 0.0
    %v942 = vsel %vm926, 1.0, 0.0
    %v943 = vsel %vm927, 1.0, 0.0
    %v944 = vsel %vm928, 1.0, 0.0
    %v945 = vsel %vm929, 1.0, 0.0
    %v946 = vadd.f32 %v930, %v931
    %v947 = vadd.f32 %v946, %v932
    %v948 = vadd.f32 %v947, %v933
    %v949 = vadd.f32 %v948, %v934
    %v950 = vadd.f32 %v949, %v935
    %v951 = vadd.f32 %v950, %v936
    %v952 = vadd.f32 %v951, %v937
    %v953 = vadd.f32 %v952, %v938
    %v954 = vadd.f32 %v953, %v939
    %v955 = vadd.f32 %v954, %v940
    %v956 = vadd.f32 %v955, %v941
    %v957 = vadd.f32 %v956, %v942
    %v958 = vadd.f32 %v957, %v943
    %v959 = vadd.f32 %v958, %v944
    %v960 = vadd.f32 %v959, %v945
    %v961 = vadd.f32 %v960, 0.0
    %s962 = sadd.s32 0, 1
    %s963 = scalar_lea.vmem [#allocation2], %s962
    %v964 = vld [vmem:[%s963] sm:$0x1]
    %v965 = vsub.f32 0.05, %v964
    %v966 = vlaneseq
    %v967 = vshrl.u32 %v966, 7
    %v968 = vsub.s32 0, %v967
    %v969 = vrot.slane %v965, %v968
    %v970 = vadd.f32 %v844, %v969
    %v971 = vadd.f32 %v845, %v969
    %v972 = vadd.f32 %v846, %v969
    %v973 = vadd.f32 %v847, %v969
    %v974 = vadd.f32 %v848, %v969
    %v975 = vadd.f32 %v849, %v969
    %v976 = vadd.f32 %v850, %v969
    %v977 = vadd.f32 %v851, %v969
    %v978 = vadd.f32 %v852, %v969
    %v979 = vadd.f32 %v853, %v969
    %v980 = vadd.f32 %v854, %v969
    %v981 = vadd.f32 %v855, %v969
    %v982 = vadd.f32 %v856, %v969
    %v983 = vadd.f32 %v857, %v969
    %v984 = vadd.f32 %v858, %v969
    %v985 = vadd.f32 %v859, %v969
    %v986 = vmax.f32 %v970, 0.0
    %v987 = vmax.f32 %v971, 0.0
    %v988 = vmax.f32 %v972, 0.0
    %v989 = vmax.f32 %v973, 0.0
    %v990 = vmax.f32 %v974, 0.0
    %v991 = vmax.f32 %v975, 0.0
    %v992 = vmax.f32 %v976, 0.0
    %v993 = vmax.f32 %v977, 0.0
    %v994 = vmax.f32 %v978, 0.0
    %v995 = vmax.f32 %v979, 0.0
    %v996 = vmax.f32 %v980, 0.0
    %v997 = vmax.f32 %v981, 0.0
    %v998 = vmax.f32 %v982, 0.0
    %v999 = vmax.f32 %v983, 0.0
    %v1000 = vmax.f32 %v984, 0.0
    %v1001 = vmax.f32 %v985, 0.0
    %v1002 = vadd.f32 %v986, %v987
    %v1003 = vadd.f32 %v1002, %v988
    %v1004 = vadd.f32 %v1003, %v989
    %v1005 = vadd.f32 %v1004, %v990
    %v1006 = vadd.f32 %v1005, %v991
    %v1007 = vadd.f32 %v1006, %v992
    %v1008 = vadd.f32 %v1007, %v993
    %v1009 = vadd.f32 %v1008, %v994
    %v1010 = vadd.f32 %v1009, %v995
    %v1011 = vadd.f32 %v1010, %v996
    %v1012 = vadd.f32 %v1011, %v997
    %v1013 = vadd.f32 %v1012, %v998
    %v1014 = vadd.f32 %v1013, %v999
    %v1015 = vadd.f32 %v1014, %v1000
    %v1016 = vadd.f32 %v1015, %v1001
    %v1017 = vadd.f32 %v913, %v1016
    %vm1018 = vcmp.gt.f32.partialorder %v986, 0.0
    %vm1019 = vcmp.gt.f32.partialorder %v987, 0.0
    %vm1020 = vcmp.gt.f32.partialorder %v988, 0.0
    %vm1021 = vcmp.gt.f32.partialorder %v989, 0.0
    %vm1022 = vcmp.gt.f32.partialorder %v990, 0.0
    %vm1023 = vcmp.gt.f32.partialorder %v991, 0.0
    %vm1024 = vcmp.gt.f32.partialorder %v992, 0.0
    %vm1025 = vcmp.gt.f32.partialorder %v993, 0.0
    %vm1026 = vcmp.gt.f32.partialorder %v994, 0.0
    %vm1027 = vcmp.gt.f32.partialorder %v995, 0.0
    %vm1028 = vcmp.gt.f32.partialorder %v996, 0.0
    %vm1029 = vcmp.gt.f32.partialorder %v997, 0.0
    %vm1030 = vcmp.gt.f32.partialorder %v998, 0.0
    %vm1031 = vcmp.gt.f32.partialorder %v999, 0.0
    %vm1032 = vcmp.gt.f32.partialorder %v1000, 0.0
    %vm1033 = vcmp.gt.f32.partialorder %v1001, 0.0
    %v1034 = vsel %vm1018, 1.0, 0.0
    %v1035 = vsel %vm1019, 1.0, 0.0
    %v1036 = vsel %vm1020, 1.0, 0.0
    %v1037 = vsel %vm1021, 1.0, 0.0
    %v1038 = vsel %vm1022, 1.0, 0.0
    %v1039 = vsel %vm1023, 1.0, 0.0
    %v1040 = vsel %vm1024, 1.0, 0.0
    %v1041 = vsel %vm1025, 1.0, 0.0
    %v1042 = vsel %vm1026, 1.0, 0.0
    %v1043 = vsel %vm1027, 1.0, 0.0
    %v1044 = vsel %vm1028, 1.0, 0.0
    %v1045 = vsel %vm1029, 1.0, 0.0
    %v1046 = vsel %vm1030, 1.0, 0.0
    %v1047 = vsel %vm1031, 1.0, 0.0
    %v1048 = vsel %vm1032, 1.0, 0.0
    %v1049 = vsel %vm1033, 1.0, 0.0
    %v1050 = vadd.f32 %v1034, %v1035
    %v1051 = vadd.f32 %v1050, %v1036
    %v1052 = vadd.f32 %v1051, %v1037
    %v1053 = vadd.f32 %v1052, %v1038
    %v1054 = vadd.f32 %v1053, %v1039
    %v1055 = vadd.f32 %v1054, %v1040
    %v1056 = vadd.f32 %v1055, %v1041
    %v1057 = vadd.f32 %v1056, %v1042
    %v1058 = vadd.f32 %v1057, %v1043
    %v1059 = vadd.f32 %v1058, %v1044
    %v1060 = vadd.f32 %v1059, %v1045
    %v1061 = vadd.f32 %v1060, %v1046
    %v1062 = vadd.f32 %v1061, %v1047
    %v1063 = vadd.f32 %v1062, %v1048
    %v1064 = vadd.f32 %v1063, %v1049
    %v1065 = vadd.f32 %v961, %v1064
    %s1066 = sadd.s32 0, 2
    %s1067 = scalar_lea.vmem [#allocation2], %s1066
    %v1068 = vld [vmem:[%s1067] sm:$0x1]
    %v1069 = vsub.f32 0.05, %v1068
    %v1070 = vlaneseq
    %v1071 = vshrl.u32 %v1070, 7
    %v1072 = vsub.s32 0, %v1071
    %v1073 = vrot.slane %v1069, %v1072
    %v1074 = vadd.f32 %v844, %v1073
    %v1075 = vadd.f32 %v845, %v1073
    %v1076 = vadd.f32 %v846, %v1073
    %v1077 = vadd.f32 %v847, %v1073
    %v1078 = vadd.f32 %v848, %v1073
    %v1079 = vadd.f32 %v849, %v1073
    %v1080 = vadd.f32 %v850, %v1073
    %v1081 = vadd.f32 %v851, %v1073
    %v1082 = vadd.f32 %v852, %v1073
    %v1083 = vadd.f32 %v853, %v1073
    %v1084 = vadd.f32 %v854, %v1073
    %v1085 = vadd.f32 %v855, %v1073
    %v1086 = vadd.f32 %v856, %v1073
    %v1087 = vadd.f32 %v857, %v1073
    %v1088 = vadd.f32 %v858, %v1073
    %v1089 = vadd.f32 %v859, %v1073
    %v1090 = vmax.f32 %v1074, 0.0
    %v1091 = vmax.f32 %v1075, 0.0
    %v1092 = vmax.f32 %v1076, 0.0
    %v1093 = vmax.f32 %v1077, 0.0
    %v1094 = vmax.f32 %v1078, 0.0
    %v1095 = vmax.f32 %v1079, 0.0
    %v1096 = vmax.f32 %v1080, 0.0
    %v1097 = vmax.f32 %v1081, 0.0
    %v1098 = vmax.f32 %v1082, 0.0
    %v1099 = vmax.f32 %v1083, 0.0
    %v1100 = vmax.f32 %v1084, 0.0
    %v1101 = vmax.f32 %v1085, 0.0
    %v1102 = vmax.f32 %v1086, 0.0
    %v1103 = vmax.f32 %v1087, 0.0
    %v1104 = vmax.f32 %v1088, 0.0
    %v1105 = vmax.f32 %v1089, 0.0
    %v1106 = vadd.f32 %v1090, %v1091
    %v1107 = vadd.f32 %v1106, %v1092
    %v1108 = vadd.f32 %v1107, %v1093
    %v1109 = vadd.f32 %v1108, %v1094
    %v1110 = vadd.f32 %v1109, %v1095
    %v1111 = vadd.f32 %v1110, %v1096
    %v1112 = vadd.f32 %v1111, %v1097
    %v1113 = vadd.f32 %v1112, %v1098
    %v1114 = vadd.f32 %v1113, %v1099
    %v1115 = vadd.f32 %v1114, %v1100
    %v1116 = vadd.f32 %v1115, %v1101
    %v1117 = vadd.f32 %v1116, %v1102
    %v1118 = vadd.f32 %v1117, %v1103
    %v1119 = vadd.f32 %v1118, %v1104
    %v1120 = vadd.f32 %v1119, %v1105
    %v1121 = vadd.f32 %v1017, %v1120
    %vm1122 = vcmp.gt.f32.partialorder %v1090, 0.0
    %vm1123 = vcmp.gt.f32.partialorder %v1091, 0.0
    %vm1124 = vcmp.gt.f32.partialorder %v1092, 0.0
    %vm1125 = vcmp.gt.f32.partialorder %v1093, 0.0
    %vm1126 = vcmp.gt.f32.partialorder %v1094, 0.0
    %vm1127 = vcmp.gt.f32.partialorder %v1095, 0.0
    %vm1128 = vcmp.gt.f32.partialorder %v1096, 0.0
    %vm1129 = vcmp.gt.f32.partialorder %v1097, 0.0
    %vm1130 = vcmp.gt.f32.partialorder %v1098, 0.0
    %vm1131 = vcmp.gt.f32.partialorder %v1099, 0.0
    %vm1132 = vcmp.gt.f32.partialorder %v1100, 0.0
    %vm1133 = vcmp.gt.f32.partialorder %v1101, 0.0
    %vm1134 = vcmp.gt.f32.partialorder %v1102, 0.0
    %vm1135 = vcmp.gt.f32.partialorder %v1103, 0.0
    %vm1136 = vcmp.gt.f32.partialorder %v1104, 0.0
    %vm1137 = vcmp.gt.f32.partialorder %v1105, 0.0
    %v1138 = vsel %vm1122, 1.0, 0.0
    %v1139 = vsel %vm1123, 1.0, 0.0
    %v1140 = vsel %vm1124, 1.0, 0.0
    %v1141 = vsel %vm1125, 1.0, 0.0
    %v1142 = vsel %vm1126, 1.0, 0.0
    %v1143 = vsel %vm1127, 1.0, 0.0
    %v1144 = vsel %vm1128, 1.0, 0.0
    %v1145 = vsel %vm1129, 1.0, 0.0
    %v1146 = vsel %vm1130, 1.0, 0.0
    %v1147 = vsel %vm1131, 1.0, 0.0
    %v1148 = vsel %vm1132, 1.0, 0.0
    %v1149 = vsel %vm1133, 1.0, 0.0
    %v1150 = vsel %vm1134, 1.0, 0.0
    %v1151 = vsel %vm1135, 1.0, 0.0
    %v1152 = vsel %vm1136, 1.0, 0.0
    %v1153 = vsel %vm1137, 1.0, 0.0
    %v1154 = vadd.f32 %v1138, %v1139
    %v1155 = vadd.f32 %v1154, %v1140
    %v1156 = vadd.f32 %v1155, %v1141
    %v1157 = vadd.f32 %v1156, %v1142
    %v1158 = vadd.f32 %v1157, %v1143
    %v1159 = vadd.f32 %v1158, %v1144
    %v1160 = vadd.f32 %v1159, %v1145
    %v1161 = vadd.f32 %v1160, %v1146
    %v1162 = vadd.f32 %v1161, %v1147
    %v1163 = vadd.f32 %v1162, %v1148
    %v1164 = vadd.f32 %v1163, %v1149
    %v1165 = vadd.f32 %v1164, %v1150
    %v1166 = vadd.f32 %v1165, %v1151
    %v1167 = vadd.f32 %v1166, %v1152
    %v1168 = vadd.f32 %v1167, %v1153
    %v1169 = vadd.f32 %v1065, %v1168
    %s1170 = sadd.s32 0, 3
    %s1171 = scalar_lea.vmem [#allocation2], %s1170
    %v1172 = vld [vmem:[%s1171] sm:$0x1]
    %v1173 = vsub.f32 0.05, %v1172
    %v1174 = vlaneseq
    %v1175 = vshrl.u32 %v1174, 7
    %v1176 = vsub.s32 0, %v1175
    %v1177 = vrot.slane %v1173, %v1176
    %v1178 = vadd.f32 %v844, %v1177
    %v1179 = vadd.f32 %v845, %v1177
    %v1180 = vadd.f32 %v846, %v1177
    %v1181 = vadd.f32 %v847, %v1177
    %v1182 = vadd.f32 %v848, %v1177
    %v1183 = vadd.f32 %v849, %v1177
    %v1184 = vadd.f32 %v850, %v1177
    %v1185 = vadd.f32 %v851, %v1177
    %v1186 = vadd.f32 %v852, %v1177
    %v1187 = vadd.f32 %v853, %v1177
    %v1188 = vadd.f32 %v854, %v1177
    %v1189 = vadd.f32 %v855, %v1177
    %v1190 = vadd.f32 %v856, %v1177
    %v1191 = vadd.f32 %v857, %v1177
    %v1192 = vadd.f32 %v858, %v1177
    %v1193 = vadd.f32 %v859, %v1177
    %v1194 = vmax.f32 %v1178, 0.0
    %v1195 = vmax.f32 %v1179, 0.0
    %v1196 = vmax.f32 %v1180, 0.0
    %v1197 = vmax.f32 %v1181, 0.0
    %v1198 = vmax.f32 %v1182, 0.0
    %v1199 = vmax.f32 %v1183, 0.0
    %v1200 = vmax.f32 %v1184, 0.0
    %v1201 = vmax.f32 %v1185, 0.0
    %v1202 = vmax.f32 %v1186, 0.0
    %v1203 = vmax.f32 %v1187, 0.0
    %v1204 = vmax.f32 %v1188, 0.0
    %v1205 = vmax.f32 %v1189, 0.0
    %v1206 = vmax.f32 %v1190, 0.0
    %v1207 = vmax.f32 %v1191, 0.0
    %v1208 = vmax.f32 %v1192, 0.0
    %v1209 = vmax.f32 %v1193, 0.0
    %v1210 = vadd.f32 %v1194, %v1195
    %v1211 = vadd.f32 %v1210, %v1196
    %v1212 = vadd.f32 %v1211, %v1197
    %v1213 = vadd.f32 %v1212, %v1198
    %v1214 = vadd.f32 %v1213, %v1199
    %v1215 = vadd.f32 %v1214, %v1200
    %v1216 = vadd.f32 %v1215, %v1201
    %v1217 = vadd.f32 %v1216, %v1202
    %v1218 = vadd.f32 %v1217, %v1203
    %v1219 = vadd.f32 %v1218, %v1204
    %v1220 = vadd.f32 %v1219, %v1205
    %v1221 = vadd.f32 %v1220, %v1206
    %v1222 = vadd.f32 %v1221, %v1207
    %v1223 = vadd.f32 %v1222, %v1208
    %v1224 = vadd.f32 %v1223, %v1209
    %v1225 = vadd.f32 %v1121, %v1224
    %vm1226 = vcmp.gt.f32.partialorder %v1194, 0.0
    %vm1227 = vcmp.gt.f32.partialorder %v1195, 0.0
    %vm1228 = vcmp.gt.f32.partialorder %v1196, 0.0
    %vm1229 = vcmp.gt.f32.partialorder %v1197, 0.0
    %vm1230 = vcmp.gt.f32.partialorder %v1198, 0.0
    %vm1231 = vcmp.gt.f32.partialorder %v1199, 0.0
    %vm1232 = vcmp.gt.f32.partialorder %v1200, 0.0
    %vm1233 = vcmp.gt.f32.partialorder %v1201, 0.0
    %vm1234 = vcmp.gt.f32.partialorder %v1202, 0.0
    %vm1235 = vcmp.gt.f32.partialorder %v1203, 0.0
    %vm1236 = vcmp.gt.f32.partialorder %v1204, 0.0
    %vm1237 = vcmp.gt.f32.partialorder %v1205, 0.0
    %vm1238 = vcmp.gt.f32.partialorder %v1206, 0.0
    %vm1239 = vcmp.gt.f32.partialorder %v1207, 0.0
    %vm1240 = vcmp.gt.f32.partialorder %v1208, 0.0
    %vm1241 = vcmp.gt.f32.partialorder %v1209, 0.0
    %v1242 = vsel %vm1226, 1.0, 0.0
    %v1243 = vsel %vm1227, 1.0, 0.0
    %v1244 = vsel %vm1228, 1.0, 0.0
    %v1245 = vsel %vm1229, 1.0, 0.0
    %v1246 = vsel %vm1230, 1.0, 0.0
    %v1247 = vsel %vm1231, 1.0, 0.0
    %v1248 = vsel %vm1232, 1.0, 0.0
    %v1249 = vsel %vm1233, 1.0, 0.0
    %v1250 = vsel %vm1234, 1.0, 0.0
    %v1251 = vsel %vm1235, 1.0, 0.0
    %v1252 = vsel %vm1236, 1.0, 0.0
    %v1253 = vsel %vm1237, 1.0, 0.0
    %v1254 = vsel %vm1238, 1.0, 0.0
    %v1255 = vsel %vm1239, 1.0, 0.0
    %v1256 = vsel %vm1240, 1.0, 0.0
    %v1257 = vsel %vm1241, 1.0, 0.0
    %v1258 = vadd.f32 %v1242, %v1243
    %v1259 = vadd.f32 %v1258, %v1244
    %v1260 = vadd.f32 %v1259, %v1245
    %v1261 = vadd.f32 %v1260, %v1246
    %v1262 = vadd.f32 %v1261, %v1247
    %v1263 = vadd.f32 %v1262, %v1248
    %v1264 = vadd.f32 %v1263, %v1249
    %v1265 = vadd.f32 %v1264, %v1250
    %v1266 = vadd.f32 %v1265, %v1251
    %v1267 = vadd.f32 %v1266, %v1252
    %v1268 = vadd.f32 %v1267, %v1253
    %v1269 = vadd.f32 %v1268, %v1254
    %v1270 = vadd.f32 %v1269, %v1255
    %v1271 = vadd.f32 %v1270, %v1256
    %v1272 = vadd.f32 %v1271, %v1257
    %v1273 = vadd.f32 %v1169, %v1272
    %s1274 = sadd.s32 0, 4
    %s1275 = scalar_lea.vmem [#allocation2], %s1274
    %v1276 = vld [vmem:[%s1275] sm:$0x1]
    %v1277 = vsub.f32 0.05, %v1276
    %v1278 = vlaneseq
    %v1279 = vshrl.u32 %v1278, 7
    %v1280 = vsub.s32 0, %v1279
    %v1281 = vrot.slane %v1277, %v1280
    %v1282 = vadd.f32 %v844, %v1281
    %v1283 = vadd.f32 %v845, %v1281
    %v1284 = vadd.f32 %v846, %v1281
    %v1285 = vadd.f32 %v847, %v1281
    %v1286 = vadd.f32 %v848, %v1281
    %v1287 = vadd.f32 %v849, %v1281
    %v1288 = vadd.f32 %v850, %v1281
    %v1289 = vadd.f32 %v851, %v1281
    %v1290 = vadd.f32 %v852, %v1281
    %v1291 = vadd.f32 %v853, %v1281
    %v1292 = vadd.f32 %v854, %v1281
    %v1293 = vadd.f32 %v855, %v1281
    %v1294 = vadd.f32 %v856, %v1281
    %v1295 = vadd.f32 %v857, %v1281
    %v1296 = vadd.f32 %v858, %v1281
    %v1297 = vadd.f32 %v859, %v1281
    %v1298 = vmax.f32 %v1282, 0.0
    %v1299 = vmax.f32 %v1283, 0.0
    %v1300 = vmax.f32 %v1284, 0.0
    %v1301 = vmax.f32 %v1285, 0.0
    %v1302 = vmax.f32 %v1286, 0.0
    %v1303 = vmax.f32 %v1287, 0.0
    %v1304 = vmax.f32 %v1288, 0.0
    %v1305 = vmax.f32 %v1289, 0.0
    %v1306 = vmax.f32 %v1290, 0.0
    %v1307 = vmax.f32 %v1291, 0.0
    %v1308 = vmax.f32 %v1292, 0.0
    %v1309 = vmax.f32 %v1293, 0.0
    %v1310 = vmax.f32 %v1294, 0.0
    %v1311 = vmax.f32 %v1295, 0.0
    %v1312 = vmax.f32 %v1296, 0.0
    %v1313 = vmax.f32 %v1297, 0.0
    %v1314 = vadd.f32 %v1298, %v1299
    %v1315 = vadd.f32 %v1314, %v1300
    %v1316 = vadd.f32 %v1315, %v1301
    %v1317 = vadd.f32 %v1316, %v1302
    %v1318 = vadd.f32 %v1317, %v1303
    %v1319 = vadd.f32 %v1318, %v1304
    %v1320 = vadd.f32 %v1319, %v1305
    %v1321 = vadd.f32 %v1320, %v1306
    %v1322 = vadd.f32 %v1321, %v1307
    %v1323 = vadd.f32 %v1322, %v1308
    %v1324 = vadd.f32 %v1323, %v1309
    %v1325 = vadd.f32 %v1324, %v1310
    %v1326 = vadd.f32 %v1325, %v1311
    %v1327 = vadd.f32 %v1326, %v1312
    %v1328 = vadd.f32 %v1327, %v1313
    %v1329 = vadd.f32 %v1225, %v1328
    %vm1330 = vcmp.gt.f32.partialorder %v1298, 0.0
    %vm1331 = vcmp.gt.f32.partialorder %v1299, 0.0
    %vm1332 = vcmp.gt.f32.partialorder %v1300, 0.0
    %vm1333 = vcmp.gt.f32.partialorder %v1301, 0.0
    %vm1334 = vcmp.gt.f32.partialorder %v1302, 0.0
    %vm1335 = vcmp.gt.f32.partialorder %v1303, 0.0
    %vm1336 = vcmp.gt.f32.partialorder %v1304, 0.0
    %vm1337 = vcmp.gt.f32.partialorder %v1305, 0.0
    %vm1338 = vcmp.gt.f32.partialorder %v1306, 0.0
    %vm1339 = vcmp.gt.f32.partialorder %v1307, 0.0
    %vm1340 = vcmp.gt.f32.partialorder %v1308, 0.0
    %vm1341 = vcmp.gt.f32.partialorder %v1309, 0.0
    %vm1342 = vcmp.gt.f32.partialorder %v1310, 0.0
    %vm1343 = vcmp.gt.f32.partialorder %v1311, 0.0
    %vm1344 = vcmp.gt.f32.partialorder %v1312, 0.0
    %vm1345 = vcmp.gt.f32.partialorder %v1313, 0.0
    %v1346 = vsel %vm1330, 1.0, 0.0
    %v1347 = vsel %vm1331, 1.0, 0.0
    %v1348 = vsel %vm1332, 1.0, 0.0
    %v1349 = vsel %vm1333, 1.0, 0.0
    %v1350 = vsel %vm1334, 1.0, 0.0
    %v1351 = vsel %vm1335, 1.0, 0.0
    %v1352 = vsel %vm1336, 1.0, 0.0
    %v1353 = vsel %vm1337, 1.0, 0.0
    %v1354 = vsel %vm1338, 1.0, 0.0
    %v1355 = vsel %vm1339, 1.0, 0.0
    %v1356 = vsel %vm1340, 1.0, 0.0
    %v1357 = vsel %vm1341, 1.0, 0.0
    %v1358 = vsel %vm1342, 1.0, 0.0
    %v1359 = vsel %vm1343, 1.0, 0.0
    %v1360 = vsel %vm1344, 1.0, 0.0
    %v1361 = vsel %vm1345, 1.0, 0.0
    %v1362 = vadd.f32 %v1346, %v1347
    %v1363 = vadd.f32 %v1362, %v1348
    %v1364 = vadd.f32 %v1363, %v1349
    %v1365 = vadd.f32 %v1364, %v1350
    %v1366 = vadd.f32 %v1365, %v1351
    %v1367 = vadd.f32 %v1366, %v1352
    %v1368 = vadd.f32 %v1367, %v1353
    %v1369 = vadd.f32 %v1368, %v1354
    %v1370 = vadd.f32 %v1369, %v1355
    %v1371 = vadd.f32 %v1370, %v1356
    %v1372 = vadd.f32 %v1371, %v1357
    %v1373 = vadd.f32 %v1372, %v1358
    %v1374 = vadd.f32 %v1373, %v1359
    %v1375 = vadd.f32 %v1374, %v1360
    %v1376 = vadd.f32 %v1375, %v1361
    %v1377 = vadd.f32 %v1273, %v1376
    %s1378 = sadd.s32 0, 5
    %s1379 = scalar_lea.vmem [#allocation2], %s1378
    %v1380 = vld [vmem:[%s1379] sm:$0x1]
    %v1381 = vsub.f32 0.05, %v1380
    %v1382 = vlaneseq
    %v1383 = vshrl.u32 %v1382, 7
    %v1384 = vsub.s32 0, %v1383
    %v1385 = vrot.slane %v1381, %v1384
    %v1386 = vadd.f32 %v844, %v1385
    %v1387 = vadd.f32 %v845, %v1385
    %v1388 = vadd.f32 %v846, %v1385
    %v1389 = vadd.f32 %v847, %v1385
    %v1390 = vadd.f32 %v848, %v1385
    %v1391 = vadd.f32 %v849, %v1385
    %v1392 = vadd.f32 %v850, %v1385
    %v1393 = vadd.f32 %v851, %v1385
    %v1394 = vadd.f32 %v852, %v1385
    %v1395 = vadd.f32 %v853, %v1385
    %v1396 = vadd.f32 %v854, %v1385
    %v1397 = vadd.f32 %v855, %v1385
    %v1398 = vadd.f32 %v856, %v1385
    %v1399 = vadd.f32 %v857, %v1385
    %v1400 = vadd.f32 %v858, %v1385
    %v1401 = vadd.f32 %v859, %v1385
    %v1402 = vmax.f32 %v1386, 0.0
    %v1403 = vmax.f32 %v1387, 0.0
    %v1404 = vmax.f32 %v1388, 0.0
    %v1405 = vmax.f32 %v1389, 0.0
    %v1406 = vmax.f32 %v1390, 0.0
    %v1407 = vmax.f32 %v1391, 0.0
    %v1408 = vmax.f32 %v1392, 0.0
    %v1409 = vmax.f32 %v1393, 0.0
    %v1410 = vmax.f32 %v1394, 0.0
    %v1411 = vmax.f32 %v1395, 0.0
    %v1412 = vmax.f32 %v1396, 0.0
    %v1413 = vmax.f32 %v1397, 0.0
    %v1414 = vmax.f32 %v1398, 0.0
    %v1415 = vmax.f32 %v1399, 0.0
    %v1416 = vmax.f32 %v1400, 0.0
    %v1417 = vmax.f32 %v1401, 0.0
    %v1418 = vadd.f32 %v1402, %v1403
    %v1419 = vadd.f32 %v1418, %v1404
    %v1420 = vadd.f32 %v1419, %v1405
    %v1421 = vadd.f32 %v1420, %v1406
    %v1422 = vadd.f32 %v1421, %v1407
    %v1423 = vadd.f32 %v1422, %v1408
    %v1424 = vadd.f32 %v1423, %v1409
    %v1425 = vadd.f32 %v1424, %v1410
    %v1426 = vadd.f32 %v1425, %v1411
    %v1427 = vadd.f32 %v1426, %v1412
    %v1428 = vadd.f32 %v1427, %v1413
    %v1429 = vadd.f32 %v1428, %v1414
    %v1430 = vadd.f32 %v1429, %v1415
    %v1431 = vadd.f32 %v1430, %v1416
    %v1432 = vadd.f32 %v1431, %v1417
    %v1433 = vadd.f32 %v1329, %v1432
    %vm1434 = vcmp.gt.f32.partialorder %v1402, 0.0
    %vm1435 = vcmp.gt.f32.partialorder %v1403, 0.0
    %vm1436 = vcmp.gt.f32.partialorder %v1404, 0.0
    %vm1437 = vcmp.gt.f32.partialorder %v1405, 0.0
    %vm1438 = vcmp.gt.f32.partialorder %v1406, 0.0
    %vm1439 = vcmp.gt.f32.partialorder %v1407, 0.0
    %vm1440 = vcmp.gt.f32.partialorder %v1408, 0.0
    %vm1441 = vcmp.gt.f32.partialorder %v1409, 0.0
    %vm1442 = vcmp.gt.f32.partialorder %v1410, 0.0
    %vm1443 = vcmp.gt.f32.partialorder %v1411, 0.0
    %vm1444 = vcmp.gt.f32.partialorder %v1412, 0.0
    %vm1445 = vcmp.gt.f32.partialorder %v1413, 0.0
    %vm1446 = vcmp.gt.f32.partialorder %v1414, 0.0
    %vm1447 = vcmp.gt.f32.partialorder %v1415, 0.0
    %vm1448 = vcmp.gt.f32.partialorder %v1416, 0.0
    %vm1449 = vcmp.gt.f32.partialorder %v1417, 0.0
    %v1450 = vsel %vm1434, 1.0, 0.0
    %v1451 = vsel %vm1435, 1.0, 0.0
    %v1452 = vsel %vm1436, 1.0, 0.0
    %v1453 = vsel %vm1437, 1.0, 0.0
    %v1454 = vsel %vm1438, 1.0, 0.0
    %v1455 = vsel %vm1439, 1.0, 0.0
    %v1456 = vsel %vm1440, 1.0, 0.0
    %v1457 = vsel %vm1441, 1.0, 0.0
    %v1458 = vsel %vm1442, 1.0, 0.0
    %v1459 = vsel %vm1443, 1.0, 0.0
    %v1460 = vsel %vm1444, 1.0, 0.0
    %v1461 = vsel %vm1445, 1.0, 0.0
    %v1462 = vsel %vm1446, 1.0, 0.0
    %v1463 = vsel %vm1447, 1.0, 0.0
    %v1464 = vsel %vm1448, 1.0, 0.0
    %v1465 = vsel %vm1449, 1.0, 0.0
    %v1466 = vadd.f32 %v1450, %v1451
    %v1467 = vadd.f32 %v1466, %v1452
    %v1468 = vadd.f32 %v1467, %v1453
    %v1469 = vadd.f32 %v1468, %v1454
    %v1470 = vadd.f32 %v1469, %v1455
    %v1471 = vadd.f32 %v1470, %v1456
    %v1472 = vadd.f32 %v1471, %v1457
    %v1473 = vadd.f32 %v1472, %v1458
    %v1474 = vadd.f32 %v1473, %v1459
    %v1475 = vadd.f32 %v1474, %v1460
    %v1476 = vadd.f32 %v1475, %v1461
    %v1477 = vadd.f32 %v1476, %v1462
    %v1478 = vadd.f32 %v1477, %v1463
    %v1479 = vadd.f32 %v1478, %v1464
    %v1480 = vadd.f32 %v1479, %v1465
    %v1481 = vadd.f32 %v1377, %v1480
    %s1482 = sadd.s32 0, 6
    %s1483 = scalar_lea.vmem [#allocation2], %s1482
    %v1484 = vld [vmem:[%s1483] sm:$0x1]
    %v1485 = vsub.f32 0.05, %v1484
    %v1486 = vlaneseq
    %v1487 = vshrl.u32 %v1486, 7
    %v1488 = vsub.s32 0, %v1487
    %v1489 = vrot.slane %v1485, %v1488
    %v1490 = vadd.f32 %v844, %v1489
    %v1491 = vadd.f32 %v845, %v1489
    %v1492 = vadd.f32 %v846, %v1489
    %v1493 = vadd.f32 %v847, %v1489
    %v1494 = vadd.f32 %v848, %v1489
    %v1495 = vadd.f32 %v849, %v1489
    %v1496 = vadd.f32 %v850, %v1489
    %v1497 = vadd.f32 %v851, %v1489
    %v1498 = vadd.f32 %v852, %v1489
    %v1499 = vadd.f32 %v853, %v1489
    %v1500 = vadd.f32 %v854, %v1489
    %v1501 = vadd.f32 %v855, %v1489
    %v1502 = vadd.f32 %v856, %v1489
    %v1503 = vadd.f32 %v857, %v1489
    %v1504 = vadd.f32 %v858, %v1489
    %v1505 = vadd.f32 %v859, %v1489
    %v1506 = vmax.f32 %v1490, 0.0
    %v1507 = vmax.f32 %v1491, 0.0
    %v1508 = vmax.f32 %v1492, 0.0
    %v1509 = vmax.f32 %v1493, 0.0
    %v1510 = vmax.f32 %v1494, 0.0
    %v1511 = vmax.f32 %v1495, 0.0
    %v1512 = vmax.f32 %v1496, 0.0
    %v1513 = vmax.f32 %v1497, 0.0
    %v1514 = vmax.f32 %v1498, 0.0
    %v1515 = vmax.f32 %v1499, 0.0
    %v1516 = vmax.f32 %v1500, 0.0
    %v1517 = vmax.f32 %v1501, 0.0
    %v1518 = vmax.f32 %v1502, 0.0
    %v1519 = vmax.f32 %v1503, 0.0
    %v1520 = vmax.f32 %v1504, 0.0
    %v1521 = vmax.f32 %v1505, 0.0
    %v1522 = vadd.f32 %v1506, %v1507
    %v1523 = vadd.f32 %v1522, %v1508
    %v1524 = vadd.f32 %v1523, %v1509
    %v1525 = vadd.f32 %v1524, %v1510
    %v1526 = vadd.f32 %v1525, %v1511
    %v1527 = vadd.f32 %v1526, %v1512
    %v1528 = vadd.f32 %v1527, %v1513
    %v1529 = vadd.f32 %v1528, %v1514
    %v1530 = vadd.f32 %v1529, %v1515
    %v1531 = vadd.f32 %v1530, %v1516
    %v1532 = vadd.f32 %v1531, %v1517
    %v1533 = vadd.f32 %v1532, %v1518
    %v1534 = vadd.f32 %v1533, %v1519
    %v1535 = vadd.f32 %v1534, %v1520
    %v1536 = vadd.f32 %v1535, %v1521
    %v1537 = vadd.f32 %v1433, %v1536
    %vm1538 = vcmp.gt.f32.partialorder %v1506, 0.0
    %vm1539 = vcmp.gt.f32.partialorder %v1507, 0.0
    %vm1540 = vcmp.gt.f32.partialorder %v1508, 0.0
    %vm1541 = vcmp.gt.f32.partialorder %v1509, 0.0
    %vm1542 = vcmp.gt.f32.partialorder %v1510, 0.0
    %vm1543 = vcmp.gt.f32.partialorder %v1511, 0.0
    %vm1544 = vcmp.gt.f32.partialorder %v1512, 0.0
    %vm1545 = vcmp.gt.f32.partialorder %v1513, 0.0
    %vm1546 = vcmp.gt.f32.partialorder %v1514, 0.0
    %vm1547 = vcmp.gt.f32.partialorder %v1515, 0.0
    %vm1548 = vcmp.gt.f32.partialorder %v1516, 0.0
    %vm1549 = vcmp.gt.f32.partialorder %v1517, 0.0
    %vm1550 = vcmp.gt.f32.partialorder %v1518, 0.0
    %vm1551 = vcmp.gt.f32.partialorder %v1519, 0.0
    %vm1552 = vcmp.gt.f32.partialorder %v1520, 0.0
    %vm1553 = vcmp.gt.f32.partialorder %v1521, 0.0
    %v1554 = vsel %vm1538, 1.0, 0.0
    %v1555 = vsel %vm1539, 1.0, 0.0
    %v1556 = vsel %vm1540, 1.0, 0.0
    %v1557 = vsel %vm1541, 1.0, 0.0
    %v1558 = vsel %vm1542, 1.0, 0.0
    %v1559 = vsel %vm1543, 1.0, 0.0
    %v1560 = vsel %vm1544, 1.0, 0.0
    %v1561 = vsel %vm1545, 1.0, 0.0
    %v1562 = vsel %vm1546, 1.0, 0.0
    %v1563 = vsel %vm1547, 1.0, 0.0
    %v1564 = vsel %vm1548, 1.0, 0.0
    %v1565 = vsel %vm1549, 1.0, 0.0
    %v1566 = vsel %vm1550, 1.0, 0.0
    %v1567 = vsel %vm1551, 1.0, 0.0
    %v1568 = vsel %vm1552, 1.0, 0.0
    %v1569 = vsel %vm1553, 1.0, 0.0
    %v1570 = vadd.f32 %v1554, %v1555
    %v1571 = vadd.f32 %v1570, %v1556
    %v1572 = vadd.f32 %v1571, %v1557
    %v1573 = vadd.f32 %v1572, %v1558
    %v1574 = vadd.f32 %v1573, %v1559
    %v1575 = vadd.f32 %v1574, %v1560
    %v1576 = vadd.f32 %v1575, %v1561
    %v1577 = vadd.f32 %v1576, %v1562
    %v1578 = vadd.f32 %v1577, %v1563
    %v1579 = vadd.f32 %v1578, %v1564
    %v1580 = vadd.f32 %v1579, %v1565
    %v1581 = vadd.f32 %v1580, %v1566
    %v1582 = vadd.f32 %v1581, %v1567
    %v1583 = vadd.f32 %v1582, %v1568
    %v1584 = vadd.f32 %v1583, %v1569
    %v1585 = vadd.f32 %v1481, %v1584
    %s1586 = sadd.s32 0, 7
    %s1587 = scalar_lea.vmem [#allocation2], %s1586
    %v1588 = vld [vmem:[%s1587] sm:$0x1]
    %v1589 = vsub.f32 0.05, %v1588
    %v1590 = vlaneseq
    %v1591 = vshrl.u32 %v1590, 7
    %v1592 = vsub.s32 0, %v1591
    %v1593 = vrot.slane %v1589, %v1592
    %v1594 = vadd.f32 %v844, %v1593
    %v1595 = vadd.f32 %v845, %v1593
    %v1596 = vadd.f32 %v846, %v1593
    %v1597 = vadd.f32 %v847, %v1593
    %v1598 = vadd.f32 %v848, %v1593
    %v1599 = vadd.f32 %v849, %v1593
    %v1600 = vadd.f32 %v850, %v1593
    %v1601 = vadd.f32 %v851, %v1593
    %v1602 = vadd.f32 %v852, %v1593
    %v1603 = vadd.f32 %v853, %v1593
    %v1604 = vadd.f32 %v854, %v1593
    %v1605 = vadd.f32 %v855, %v1593
    %v1606 = vadd.f32 %v856, %v1593
    %v1607 = vadd.f32 %v857, %v1593
    %v1608 = vadd.f32 %v858, %v1593
    %v1609 = vadd.f32 %v859, %v1593
    %v1610 = vmax.f32 %v1594, 0.0
    %v1611 = vmax.f32 %v1595, 0.0
    %v1612 = vmax.f32 %v1596, 0.0
    %v1613 = vmax.f32 %v1597, 0.0
    %v1614 = vmax.f32 %v1598, 0.0
    %v1615 = vmax.f32 %v1599, 0.0
    %v1616 = vmax.f32 %v1600, 0.0
    %v1617 = vmax.f32 %v1601, 0.0
    %v1618 = vmax.f32 %v1602, 0.0
    %v1619 = vmax.f32 %v1603, 0.0
    %v1620 = vmax.f32 %v1604, 0.0
    %v1621 = vmax.f32 %v1605, 0.0
    %v1622 = vmax.f32 %v1606, 0.0
    %v1623 = vmax.f32 %v1607, 0.0
    %v1624 = vmax.f32 %v1608, 0.0
    %v1625 = vmax.f32 %v1609, 0.0
    %v1626 = vadd.f32 %v1610, %v1611
    %v1627 = vadd.f32 %v1626, %v1612
    %v1628 = vadd.f32 %v1627, %v1613
    %v1629 = vadd.f32 %v1628, %v1614
    %v1630 = vadd.f32 %v1629, %v1615
    %v1631 = vadd.f32 %v1630, %v1616
    %v1632 = vadd.f32 %v1631, %v1617
    %v1633 = vadd.f32 %v1632, %v1618
    %v1634 = vadd.f32 %v1633, %v1619
    %v1635 = vadd.f32 %v1634, %v1620
    %v1636 = vadd.f32 %v1635, %v1621
    %v1637 = vadd.f32 %v1636, %v1622
    %v1638 = vadd.f32 %v1637, %v1623
    %v1639 = vadd.f32 %v1638, %v1624
    %v1640 = vadd.f32 %v1639, %v1625
    %v1641 = vadd.f32 %v1537, %v1640
    %vm1642 = vcmp.gt.f32.partialorder %v1610, 0.0
    %vm1643 = vcmp.gt.f32.partialorder %v1611, 0.0
    %vm1644 = vcmp.gt.f32.partialorder %v1612, 0.0
    %vm1645 = vcmp.gt.f32.partialorder %v1613, 0.0
    %vm1646 = vcmp.gt.f32.partialorder %v1614, 0.0
    %vm1647 = vcmp.gt.f32.partialorder %v1615, 0.0
    %vm1648 = vcmp.gt.f32.partialorder %v1616, 0.0
    %vm1649 = vcmp.gt.f32.partialorder %v1617, 0.0
    %vm1650 = vcmp.gt.f32.partialorder %v1618, 0.0
    %vm1651 = vcmp.gt.f32.partialorder %v1619, 0.0
    %vm1652 = vcmp.gt.f32.partialorder %v1620, 0.0
    %vm1653 = vcmp.gt.f32.partialorder %v1621, 0.0
    %vm1654 = vcmp.gt.f32.partialorder %v1622, 0.0
    %vm1655 = vcmp.gt.f32.partialorder %v1623, 0.0
    %vm1656 = vcmp.gt.f32.partialorder %v1624, 0.0
    %vm1657 = vcmp.gt.f32.partialorder %v1625, 0.0
    %v1658 = vsel %vm1642, 1.0, 0.0
    %v1659 = vsel %vm1643, 1.0, 0.0
    %v1660 = vsel %vm1644, 1.0, 0.0
    %v1661 = vsel %vm1645, 1.0, 0.0
    %v1662 = vsel %vm1646, 1.0, 0.0
    %v1663 = vsel %vm1647, 1.0, 0.0
    %v1664 = vsel %vm1648, 1.0, 0.0
    %v1665 = vsel %vm1649, 1.0, 0.0
    %v1666 = vsel %vm1650, 1.0, 0.0
    %v1667 = vsel %vm1651, 1.0, 0.0
    %v1668 = vsel %vm1652, 1.0, 0.0
    %v1669 = vsel %vm1653, 1.0, 0.0
    %v1670 = vsel %vm1654, 1.0, 0.0
    %v1671 = vsel %vm1655, 1.0, 0.0
    %v1672 = vsel %vm1656, 1.0, 0.0
    %v1673 = vsel %vm1657, 1.0, 0.0
    %v1674 = vadd.f32 %v1658, %v1659
    %v1675 = vadd.f32 %v1674, %v1660
    %v1676 = vadd.f32 %v1675, %v1661
    %v1677 = vadd.f32 %v1676, %v1662
    %v1678 = vadd.f32 %v1677, %v1663
    %v1679 = vadd.f32 %v1678, %v1664
    %v1680 = vadd.f32 %v1679, %v1665
    %v1681 = vadd.f32 %v1680, %v1666
    %v1682 = vadd.f32 %v1681, %v1667
    %v1683 = vadd.f32 %v1682, %v1668
    %v1684 = vadd.f32 %v1683, %v1669
    %v1685 = vadd.f32 %v1684, %v1670
    %v1686 = vadd.f32 %v1685, %v1671
    %v1687 = vadd.f32 %v1686, %v1672
    %v1688 = vadd.f32 %v1687, %v1673
    %v1689 = vadd.f32 %v1585, %v1688
    %1690 = vadd.xlane.f32.xlu0 %v1641
    %v1691 = vpop.xlane.xlu0 %1690
    %v1692 = vrot.slane %v1691, 4
    %v1693 = vadd.f32 %v1691, %v1692
    %v1694 = vrot.slane %v1693, 2
    %v1695 = vadd.f32 %v1693, %v1694
    %v1696 = vrot.slane %v1695, 1
    %v1697 = vadd.f32 %v1695, %v1696
    %s1698 = vtos %v1697
    %1699 = vadd.xlane.f32.xlu0 %v1689
    %v1700 = vpop.xlane.xlu0 %1699
    %v1701 = vrot.slane %v1700, 4
    %v1702 = vadd.f32 %v1700, %v1701
    %v1703 = vrot.slane %v1702, 2
    %v1704 = vadd.f32 %v1702, %v1703
    %v1705 = vrot.slane %v1704, 1
    %v1706 = vadd.f32 %v1704, %v1705
    %s1707 = vtos %v1706
    %v1708 = vld [vmem:[%s0] sm:$0xff]
    %vm1709 = vcmp.lt.s32.totalorder %v29, 5
    %v1710 = vsel %vm1709, %v1708, -3e+38
    %v1711 = vrot.slane %v1710, 4
    %v1712 = vmax.f32 %v1710, %v1711
    %v1713 = vrot.slane %v1712, 2
    %v1714 = vmax.f32 %v1712, %v1713
    %v1715 = vrot.slane %v1714, 1
    %v1716 = vmax.f32 %v1714, %v1715
    %v1717 = vsub.f32 %v1710, %v1716
    %v1718 = vmul.f32 %v1717, 1.442695
    %v1719 = vpow.pop %v1718
    %v1720 = vrot.slane %v1719, 4
    %v1721 = vadd.f32 %v1719, %v1720
    %v1722 = vrot.slane %v1721, 2
    %v1723 = vadd.f32 %v1721, %v1722
    %v1724 = vrot.slane %v1723, 1
    %v1725 = vadd.f32 %v1723, %v1724
    %v1726 = vlog2.pop %v1725
    %v1727 = vmul.f32 %v1726, 0.6931472
    %v1728 = vadd.f32 %v1716, %v1727
    %v1729 = vld [vmem:[%s1] sm:$0x1]
    %v1730 = vlaneseq
    %v1731 = vshrl.u32 %v1730, 7
    %v1732 = vsub.s32 0, %v1731
    %v1733 = vrot.slane %v1729, %v1732
    %vm1734 = vcmp.eq.s32.totalorder %v29, %v1733
    %v1735 = vsel %vm1734, %v1710, 0.0
    %v1736 = vrot.slane %v1735, 4
    %v1737 = vadd.f32 %v1735, %v1736
    %v1738 = vrot.slane %v1737, 2
    %v1739 = vadd.f32 %v1737, %v1738
    %v1740 = vrot.slane %v1739, 1
    %v1741 = vadd.f32 %v1739, %v1740
    %v1742 = vsub.f32 %v1728, %v1741
    %v1743 = vsel %vm65, %v1742, 0.0
    %vm1744 = vcmask 1040384
    %v1745 = vsel %vm1744, %v1743, 0.0
    %1746 = vadd.xlane.f32.xlu0 %v1745
    %v1747 = vpop.xlane.xlu0 %1746
    %v1748 = vrot.slane %v1747, 4
    %v1749 = vadd.f32 %v1747, %v1748
    %v1750 = vrot.slane %v1749, 2
    %v1751 = vadd.f32 %v1749, %v1750
    %v1752 = vrot.slane %v1751, 1
    %v1753 = vadd.f32 %v1751, %v1752
    %s1754 = vtos %v1753
    %v1755 = vld [vmem:[%s3] sm:$0x1]
    %v1756 = vsel %vm65, %v1755, 0.0
    %v1757 = vsel %vm1744, %v1756, 0.0
    %1758 = vadd.xlane.f32.xlu0 %v1757
    %v1759 = vpop.xlane.xlu0 %1758
    %v1760 = vrot.slane %v1759, 4
    %v1761 = vadd.f32 %v1759, %v1760
    %v1762 = vrot.slane %v1761, 2
    %v1763 = vadd.f32 %v1761, %v1762
    %v1764 = vrot.slane %v1763, 1
    %v1765 = vadd.f32 %v1763, %v1764
    %s1766 = vtos %v1765
    %vm1767 = vcmp.eq.s32.totalorder %v46, 0
    %v1768 = vstv %s1754
    %v1769 = vsel %vm1767, %v1768, 0.0
    %vm1770 = vcmp.eq.s32.totalorder %v46, 1
    %v1771 = vstv %s1766
    %v1772 = vsel %vm1770, %v1771, 0.0
    %v1773 = vadd.f32 %v1769, %v1772
    %vm1774 = vcmp.eq.s32.totalorder %v46, 2
    %v1775 = vstv %s1698
    %v1776 = vsel %vm1774, %v1775, 0.0
    %v1777 = vadd.f32 %v1773, %v1776
    %vm1778 = vcmp.eq.s32.totalorder %v46, 3
    %v1779 = vstv %s1707
    %v1780 = vsel %vm1778, %v1779, 0.0
    %v1781 = vadd.f32 %v1777, %v1780
    %1782 = vst [vmem:[#allocation4] sm:$0xff] %v1781
    // Predicated region
    $region30: #{tpu_custom_call.1} parent=1 // pred_check
      _
    $region31: #{tpu_custom_call.1} parent=1 // pred_check_branch
      %1784 = sbr.rel (0) target = $region33
    $region32: #{tpu_custom_call.1} parent=1 // pred_region
      %s1786 = ssub.s32 128, 128
      %1787 = vsyncadd [#allocation5], %s1786
      %s1789 = sshll.u32 [#allocation4], 4
      %s1790 = int_to_ptr.vmem [resolvable:$true] %s1789
      %1792 = dma.vmem_to_hbm [thread:$0]  %s1790, 128, %s7, [#allocation5]
    $region33: #{tpu_custom_call.1} parent=1 // pred_fallthru
      _
    // Predicated region
    $region34: #{tpu_custom_call.1} parent=1 // pred_check
      _
    $region35: #{tpu_custom_call.1} parent=1 // pred_check_branch
      %1794 = sbr.rel (0) target = $region37
    $region36: #{tpu_custom_call.1} parent=1 // pred_region
      %1795 = dma.done [#allocation5], 128
    $region37: #{tpu_custom_call.1} parent=1 // pred_fallthru
      _
    %1796 = vsyncpa [#allocation5], 1

</llo_original>
